<compile_context>
chip_gen: v6e
topology: v6e:2x2x1
jax: 0.10.0
libtpu: 0.0.40
codegen_flags: <defaults>
</compile_context>

<pallas_src>
import jax
import jax.numpy as jnp
from jax.experimental import pallas as pl
from jax.experimental.pallas import tpu as pltpu

# ---- small synthetic shapes consistent with the forward pass ----
B, C_IMG, H, W = 2, 3, 16, 16      # image / frame spatial dims (NCHW)
T = 8                              # frames per clip
D_CLIP = 64                        # CLIP feature dim
N_CLASSES = 4                      # logreg classes (predict_proba columns)
F_CONV = 16                        # mobilenet per-frame feature dim
H_RNN = 32                         # RNN hidden size
N_RNN_OUT = 4                      # RNN head classes

VMEM_SPEC = pl.BlockSpec(memory_space=pltpu.MemorySpace.VMEM)


# ------------------------------------------------------------------
# Fused kernel: CLIP+logreg branch, MobileNet frame features, RNN+head,
# and the final concatenation -- one pallas_call, one output store.
# ------------------------------------------------------------------
def ensemble_kernel(img_ref, frames_ref, w1_ref, b1_ref, w2_ref, b2_ref,
                    wc_ref, bc_ref, wxh_ref, whh_ref, bh_ref, who_ref, bo_ref,
                    out_ref):
    # ---------- CLIP encode_image + logreg predict_proba + log-odds ----------
    # img: [B, C*H*W] bf16, w1: [C*H*W, D_CLIP] bf16  -> bf16 MXU, f32 accumulation.
    feat = jnp.dot(img_ref[...], w1_ref[...], preferred_element_type=jnp.float32)
    feat = jnp.maximum(feat + b1_ref[...], 0.0)                         # "encode_image" features
    logits = jnp.dot(feat, w2_ref[...], preferred_element_type=jnp.float32) + b2_ref[...]
    # predict_proba == softmax over classes; log(p_i/(1-p_i)) from logits (stable, no division):
    #   = (z_i - m) - log(sum_j exp(z_j - m) - exp(z_i - m))
    m = jnp.max(logits, axis=-1, keepdims=True)
    z = logits - m
    e = jnp.exp(z)
    s = jnp.sum(e, axis=-1, keepdims=True)
    clip_logodds = z - jnp.log(s - e)                                   # [B, N_CLASSES] f32

    # ---------- MobileNetV3-style per-frame features (1x1 conv + ReLU + GAP) ----------
    # frames: [B*T, C, H*W] (lane axis = H*W = 256, dense); wc: [C, 1, F_CONV, 1]
    x = frames_ref[...]
    wc = wc_ref[...]
    bt, c, hw = x.shape
    # Initialize from the first channel term, then FMAs (C=3 is tiny -> keep it on the VPU;
    # an MXU contraction with K=3 would be almost entirely padding).
    y = x[:, 0:1, :] * wc[0]                                            # [BT, F, HW]
    for ci in range(1, c):                                              # static unroll over C
        y = y + x[:, ci:ci + 1, :] * wc[ci]
    y = jnp.maximum(y + bc_ref[...], 0.0)                               # bc: [1, F, 1]
    frame_feat = jnp.mean(y, axis=2)                                    # [BT, F] global avg pool (lane reduce)

    # ---------- Elman RNN over time + linear head ----------
    # Hoist the input projection out of the recurrence: one [BT,F] x [F,H] matmul, bias added once.
    xw = jnp.dot(frame_feat, wxh_ref[...], preferred_element_type=jnp.float32) + bh_ref[...]
    bsz = img_ref.shape[0]
    tsteps = bt // bsz
    whh = whh_ref[...]
    hdim = whh.shape[0]
    xw3 = xw.reshape(bsz, tsteps, hdim)                                 # row bt = b*T + t
    h = jnp.zeros((bsz, hdim), jnp.float32)
    for t in range(tsteps):                                             # static unroll, T = 8
        h = jnp.tanh(xw3[:, t, :] + jnp.dot(h, whh, preferred_element_type=jnp.float32))
    rnn_logits = jnp.dot(h, who_ref[...], preferred_element_type=jnp.float32) + bo_ref[...]

    # ---------- torch.cat((clip_glin_pred, rnn_logits), dim=1) ----------
    out_ref[...] = jnp.concatenate(
        [clip_logodds.astype(jnp.float32), rnn_logits.astype(jnp.float32)], axis=1
    )


# ------------------------------------------------------------------
# Wrapper: layout plumbing only (pure reshapes / dtype casts), then one pallas_call.
# ------------------------------------------------------------------
def ensemble_forward(frames, image, classname, params):
    del classname  # unused by the reference forward
    bsz = image.shape[0]
    t = frames.shape[1]
    image_flat = image.reshape(bsz, -1).astype(jnp.bfloat16)                      # [B, C*H*W]
    frames_2d = frames.reshape(bsz * t, frames.shape[2], -1).astype(jnp.float32)  # [B*T, C, H*W] (pure reshape)
    return pl.pallas_call(
        ensemble_kernel,
        out_shape=jax.ShapeDtypeStruct((bsz, N_CLASSES + N_RNN_OUT), jnp.float32),
        in_specs=[VMEM_SPEC] * 13,
        out_specs=VMEM_SPEC,
    )(image_flat, frames_2d,
      params["w1"], params["b1"], params["w2"], params["b2"],
      params["wc"], params["bc"],
      params["wxh"], params["whh"], params["bh"], params["who"], params["bo"])


# ------------------------------------------------------------------
# Pure-JAX reference (same math, same dtypes) for correctness checking.
# ------------------------------------------------------------------
def ensemble_reference(frames, image, params):
    bsz = image.shape[0]
    t = frames.shape[1]
    img = image.reshape(bsz, -1).astype(jnp.bfloat16)
    feat = jnp.dot(img, params["w1"], preferred_element_type=jnp.float32)
    feat = jnp.maximum(feat + params["b1"], 0.0)
    logits = jnp.dot(feat, params["w2"], preferred_element_type=jnp.float32) + params["b2"]
    p = jax.nn.softmax(logits, axis=-1)
    clip_logodds = jnp.log(p / (1.0 - p))

    x = frames.reshape(bsz * t, frames.shape[2], -1).astype(jnp.float32)   # [BT, C, HW]
    wc = params["wc"]                                                      # [C, 1, F, 1]
    y = jnp.sum(x[:, :, None, :] * wc[None, :, 0, :, :], axis=1)           # [BT, F, HW]
    y = jnp.maximum(y + params["bc"], 0.0)
    frame_feat = jnp.mean(y, axis=2)                                       # [BT, F]

    xw = jnp.dot(frame_feat, params["wxh"], preferred_element_type=jnp.float32) + params["bh"]
    xw3 = xw.reshape(bsz, t, H_RNN)
    h = jnp.zeros((bsz, H_RNN), jnp.float32)
    for ts in range(t):
        h = jnp.tanh(xw3[:, ts, :] + jnp.dot(h, params["whh"], preferred_element_type=jnp.float32))
    rnn_logits = jnp.dot(h, params["who"], preferred_element_type=jnp.float32) + params["bo"]
    return jnp.concatenate([clip_logodds.astype(jnp.float32), rnn_logits.astype(jnp.float32)], axis=1)


def make_params(key):
    ks = jax.random.split(key, 9)
    s = 0.05
    return {
        # bf16 MXU operand (f32 accumulation in-kernel)
        "w1": (s * jax.random.normal(ks[0], (C_IMG * H * W, D_CLIP), jnp.float32)).astype(jnp.bfloat16),
        "b1": s * jax.random.normal(ks[1], (1, D_CLIP), jnp.float32),
        "w2": s * jax.random.normal(ks[2], (D_CLIP, N_CLASSES), jnp.float32),
        "b2": s * jax.random.normal(ks[3], (1, N_CLASSES), jnp.float32),
        # pointwise-conv weight pre-shaped for direct broadcast against [B*T, 1, H*W]
        "wc": (s * jax.random.normal(ks[4], (C_IMG, F_CONV), jnp.float32)).reshape(C_IMG, 1, F_CONV, 1),
        "bc": (s * jax.random.normal(ks[5], (1, F_CONV), jnp.float32)).reshape(1, F_CONV, 1),
        "wxh": s * jax.random.normal(ks[6], (F_CONV, H_RNN), jnp.float32),
        "whh": s * jax.random.normal(ks[7], (H_RNN, H_RNN), jnp.float32),
        "bh": jnp.zeros((1, H_RNN), jnp.float32),
        "who": s * jax.random.normal(ks[8], (H_RNN, N_RNN_OUT), jnp.float32),
        "bo": jnp.zeros((1, N_RNN_OUT), jnp.float32),
    }


if __name__ == "__main__":
    key = jax.random.PRNGKey(0)
    k_frames, k_image, k_params = jax.random.split(key, 3)

    frames = jax.random.normal(k_frames, (B, T, C_IMG, H, W), jnp.float32)  # NCHW per frame
    image = jax.random.normal(k_image, (B, C_IMG, H, W), jnp.float32)       # NCHW
    classname = None                                                        # unused by forward
    params = make_params(k_params)

    out = jax.jit(lambda f, im: ensemble_forward(f, im, classname, params))(frames, image)
    out = jax.block_until_ready(out)

    assert out.shape == (B, N_CLASSES + N_RNN_OUT), out.shape
    assert out.dtype == jnp.float32
    assert bool(jnp.all(jnp.isfinite(out)))

    ref = jax.jit(lambda f, im: ensemble_reference(f, im, params))(frames, image)
    ref = jax.block_until_ready(ref)
    max_err = float(jnp.max(jnp.abs(out - ref)))
    assert max_err < 5e-2, f"kernel/reference mismatch, max abs err = {max_err}"

    print("KERNEL_OK")
</pallas_src>

<mosaic_0001>
module attributes {stable_mosaic.version = 11 : i64} {
  func.func @ensemble_kernel(%arg0: memref<2x768xbf16, #tpu.memory_space<vmem>>, %arg1: memref<16x3x256xf32, #tpu.memory_space<vmem>>, %arg2: memref<768x64xbf16, #tpu.memory_space<vmem>>, %arg3: memref<1x64xf32, #tpu.memory_space<vmem>>, %arg4: memref<64x4xf32, #tpu.memory_space<vmem>>, %arg5: memref<1x4xf32, #tpu.memory_space<vmem>>, %arg6: memref<3x1x16x1xf32, #tpu.memory_space<vmem>>, %arg7: memref<1x16x1xf32, #tpu.memory_space<vmem>>, %arg8: memref<16x32xf32, #tpu.memory_space<vmem>>, %arg9: memref<32x32xf32, #tpu.memory_space<vmem>>, %arg10: memref<1x32xf32, #tpu.memory_space<vmem>>, %arg11: memref<32x4xf32, #tpu.memory_space<vmem>>, %arg12: memref<1x4xf32, #tpu.memory_space<vmem>>, %arg13: memref<2x8xf32, #tpu.memory_space<vmem>>) attributes {dimension_semantics = [], scalar_prefetch = 0 : i64, scratch_operands = 0 : i64, tpu.core_type = #tpu.core_type<tc>} {
    %c0 = arith.constant 0 : index
    %c0_0 = arith.constant 0 : index
    %0 = vector.load %arg0[%c0, %c0_0] : memref<2x768xbf16, #tpu.memory_space<vmem>>, vector<2x768xbf16>
    %c0_1 = arith.constant 0 : index
    %c0_2 = arith.constant 0 : index
    %1 = vector.load %arg2[%c0_1, %c0_2] : memref<768x64xbf16, #tpu.memory_space<vmem>>, vector<768x64xbf16>
    %cst = arith.constant dense<0.000000e+00> : vector<2x64xf32>
    %2 = tpu.matmul %0, %1, %cst {dimension_numbers = #tpu.dot_dimension_numbers<[1], [0], [0], [1], [0, 0, 1, 1], [], []>} : vector<2x768xbf16>, vector<768x64xbf16>, vector<2x64xf32> -> vector<2x64xf32>
    %c0_3 = arith.constant 0 : index
    %c0_4 = arith.constant 0 : index
    %3 = vector.load %arg3[%c0_3, %c0_4] : memref<1x64xf32, #tpu.memory_space<vmem>>, vector<1x64xf32>
    %4 = vector.broadcast %3 : vector<1x64xf32> to vector<2x64xf32>
    %5 = arith.addf %2, %4 : vector<2x64xf32>
    %cst_5 = arith.constant 0.000000e+00 : f32
    %6 = vector.broadcast %cst_5 : f32 to vector<2x64xf32>
    %7 = arith.maximumf %5, %6 : vector<2x64xf32>
    %c0_6 = arith.constant 0 : index
    %c0_7 = arith.constant 0 : index
    %8 = vector.load %arg4[%c0_6, %c0_7] : memref<64x4xf32, #tpu.memory_space<vmem>>, vector<64x4xf32>
    %cst_8 = arith.constant dense<0.000000e+00> : vector<2x4xf32>
    %9 = tpu.matmul %7, %8, %cst_8 {dimension_numbers = #tpu.dot_dimension_numbers<[1], [0], [0], [1], [0, 0, 1, 1], [], []>} : vector<2x64xf32>, vector<64x4xf32>, vector<2x4xf32> -> vector<2x4xf32>
    %c0_9 = arith.constant 0 : index
    %c0_10 = arith.constant 0 : index
    %10 = vector.load %arg5[%c0_9, %c0_10] : memref<1x4xf32, #tpu.memory_space<vmem>>, vector<1x4xf32>
    %11 = vector.broadcast %10 : vector<1x4xf32> to vector<2x4xf32>
    %12 = arith.addf %9, %11 : vector<2x4xf32>
    %cst_11 = arith.constant dense<0xFF800000> : vector<2xf32>
    %13 = vector.multi_reduction <maximumf>, %12, %cst_11 [1] : vector<2x4xf32> to vector<2xf32>
    %14 = vector.shape_cast %13 : vector<2xf32> to vector<2x1xf32>
    %15 = vector.broadcast %14 : vector<2x1xf32> to vector<2x4xf32>
    %16 = arith.subf %12, %15 : vector<2x4xf32>
    %17 = math.exp %16 : vector<2x4xf32>
    %cst_12 = arith.constant dense<0.000000e+00> : vector<2xf32>
    %18 = vector.multi_reduction <add>, %17, %cst_12 [1] : vector<2x4xf32> to vector<2xf32>
    %19 = vector.shape_cast %18 : vector<2xf32> to vector<2x1xf32>
    %20 = vector.broadcast %19 : vector<2x1xf32> to vector<2x4xf32>
    %21 = arith.subf %20, %17 : vector<2x4xf32>
    %22 = math.log %21 : vector<2x4xf32>
    %23 = arith.subf %16, %22 : vector<2x4xf32>
    %c0_13 = arith.constant 0 : index
    %c0_14 = arith.constant 0 : index
    %c0_15 = arith.constant 0 : index
    %24 = vector.load %arg1[%c0_13, %c0_14, %c0_15] : memref<16x3x256xf32, #tpu.memory_space<vmem>>, vector<16x3x256xf32>
    %c0_16 = arith.constant 0 : index
    %c0_17 = arith.constant 0 : index
    %c0_18 = arith.constant 0 : index
    %c0_19 = arith.constant 0 : index
    %25 = vector.load %arg6[%c0_16, %c0_17, %c0_18, %c0_19] : memref<3x1x16x1xf32, #tpu.memory_space<vmem>>, vector<3x1x16x1xf32>
    %26 = vector.extract_strided_slice %24 {offsets = [0, 0, 0], sizes = [16, 1, 256], strides = [1, 1, 1]} : vector<16x3x256xf32> to vector<16x1x256xf32>
    %27 = vector.extract_strided_slice %25 {offsets = [0, 0, 0, 0], sizes = [1, 1, 16, 1], strides = [1, 1, 1, 1]} : vector<3x1x16x1xf32> to vector<1x1x16x1xf32>
    %28 = vector.shape_cast %27 : vector<1x1x16x1xf32> to vector<1x16x1xf32>
    %29 = vector.broadcast %26 : vector<16x1x256xf32> to vector<16x16x256xf32>
    %30 = vector.broadcast %28 : vector<1x16x1xf32> to vector<16x16x256xf32>
    %31 = arith.mulf %29, %30 : vector<16x16x256xf32>
    %32 = vector.extract_strided_slice %24 {offsets = [0, 1, 0], sizes = [16, 1, 256], strides = [1, 1, 1]} : vector<16x3x256xf32> to vector<16x1x256xf32>
    %33 = vector.extract_strided_slice %25 {offsets = [1, 0, 0, 0], sizes = [1, 1, 16, 1], strides = [1, 1, 1, 1]} : vector<3x1x16x1xf32> to vector<1x1x16x1xf32>
    %34 = vector.shape_cast %33 : vector<1x1x16x1xf32> to vector<1x16x1xf32>
    %35 = vector.broadcast %32 : vector<16x1x256xf32> to vector<16x16x256xf32>
    %36 = vector.broadcast %34 : vector<1x16x1xf32> to vector<16x16x256xf32>
    %37 = arith.mulf %35, %36 : vector<16x16x256xf32>
    %38 = arith.addf %31, %37 : vector<16x16x256xf32>
    %39 = vector.extract_strided_slice %24 {offsets = [0, 2, 0], sizes = [16, 1, 256], strides = [1, 1, 1]} : vector<16x3x256xf32> to vector<16x1x256xf32>
    %40 = vector.extract_strided_slice %25 {offsets = [2, 0, 0, 0], sizes = [1, 1, 16, 1], strides = [1, 1, 1, 1]} : vector<3x1x16x1xf32> to vector<1x1x16x1xf32>
    %41 = vector.shape_cast %40 : vector<1x1x16x1xf32> to vector<1x16x1xf32>
    %42 = vector.broadcast %39 : vector<16x1x256xf32> to vector<16x16x256xf32>
    %43 = vector.broadcast %41 : vector<1x16x1xf32> to vector<16x16x256xf32>
    %44 = arith.mulf %42, %43 : vector<16x16x256xf32>
    %45 = arith.addf %38, %44 : vector<16x16x256xf32>
    %c0_20 = arith.constant 0 : index
    %c0_21 = arith.constant 0 : index
    %c0_22 = arith.constant 0 : index
    %46 = vector.load %arg7[%c0_20, %c0_21, %c0_22] : memref<1x16x1xf32, #tpu.memory_space<vmem>>, vector<1x16x1xf32>
    %47 = vector.broadcast %46 : vector<1x16x1xf32> to vector<16x16x256xf32>
    %48 = arith.addf %45, %47 : vector<16x16x256xf32>
    %cst_23 = arith.constant 0.000000e+00 : f32
    %49 = vector.broadcast %cst_23 : f32 to vector<16x16x256xf32>
    %50 = arith.maximumf %48, %49 : vector<16x16x256xf32>
    %cst_24 = arith.constant dense<0.000000e+00> : vector<16x16xf32>
    %51 = vector.multi_reduction <add>, %50, %cst_24 [2] : vector<16x16x256xf32> to vector<16x16xf32>
    %cst_25 = arith.constant 2.560000e+02 : f32
    %52 = vector.broadcast %cst_25 : f32 to vector<16x16xf32>
    %53 = arith.divf %51, %52 : vector<16x16xf32>
    %c0_26 = arith.constant 0 : index
    %c0_27 = arith.constant 0 : index
    %54 = vector.load %arg8[%c0_26, %c0_27] : memref<16x32xf32, #tpu.memory_space<vmem>>, vector<16x32xf32>
    %cst_28 = arith.constant dense<0.000000e+00> : vector<16x32xf32>
    %55 = tpu.matmul %53, %54, %cst_28 {dimension_numbers = #tpu.dot_dimension_numbers<[1], [0], [0], [1], [0, 0, 1, 1], [], []>} : vector<16x16xf32>, vector<16x32xf32>, vector<16x32xf32> -> vector<16x32xf32>
    %c0_29 = arith.constant 0 : index
    %c0_30 = arith.constant 0 : index
    %56 = vector.load %arg10[%c0_29, %c0_30] : memref<1x32xf32, #tpu.memory_space<vmem>>, vector<1x32xf32>
    %57 = vector.broadcast %56 : vector<1x32xf32> to vector<16x32xf32>
    %58 = arith.addf %55, %57 : vector<16x32xf32>
    %c0_31 = arith.constant 0 : index
    %c0_32 = arith.constant 0 : index
    %59 = vector.load %arg9[%c0_31, %c0_32] : memref<32x32xf32, #tpu.memory_space<vmem>>, vector<32x32xf32>
    %60 = vector.shape_cast %58 : vector<16x32xf32> to vector<2x8x32xf32>
    %cst_33 = arith.constant 0.000000e+00 : f32
    %61 = vector.broadcast %cst_33 : f32 to vector<2x32xf32>
    %62 = vector.extract_strided_slice %60 {offsets = [0, 0, 0], sizes = [2, 1, 32], strides = [1, 1, 1]} : vector<2x8x32xf32> to vector<2x1x32xf32>
    %63 = vector.shape_cast %62 : vector<2x1x32xf32> to vector<2x32xf32>
    %cst_34 = arith.constant dense<0.000000e+00> : vector<2x32xf32>
    %64 = tpu.matmul %61, %59, %cst_34 {dimension_numbers = #tpu.dot_dimension_numbers<[1], [0], [0], [1], [0, 0, 1, 1], [], []>} : vector<2x32xf32>, vector<32x32xf32>, vector<2x32xf32> -> vector<2x32xf32>
    %65 = arith.addf %63, %64 : vector<2x32xf32>
    %66 = math.tanh %65 : vector<2x32xf32>
    %67 = vector.extract_strided_slice %60 {offsets = [0, 1, 0], sizes = [2, 1, 32], strides = [1, 1, 1]} : vector<2x8x32xf32> to vector<2x1x32xf32>
    %68 = vector.shape_cast %67 : vector<2x1x32xf32> to vector<2x32xf32>
    %cst_35 = arith.constant dense<0.000000e+00> : vector<2x32xf32>
    %69 = tpu.matmul %66, %59, %cst_35 {dimension_numbers = #tpu.dot_dimension_numbers<[1], [0], [0], [1], [0, 0, 1, 1], [], []>} : vector<2x32xf32>, vector<32x32xf32>, vector<2x32xf32> -> vector<2x32xf32>
    %70 = arith.addf %68, %69 : vector<2x32xf32>
    %71 = math.tanh %70 : vector<2x32xf32>
    %72 = vector.extract_strided_slice %60 {offsets = [0, 2, 0], sizes = [2, 1, 32], strides = [1, 1, 1]} : vector<2x8x32xf32> to vector<2x1x32xf32>
    %73 = vector.shape_cast %72 : vector<2x1x32xf32> to vector<2x32xf32>
    %cst_36 = arith.constant dense<0.000000e+00> : vector<2x32xf32>
    %74 = tpu.matmul %71, %59, %cst_36 {dimension_numbers = #tpu.dot_dimension_numbers<[1], [0], [0], [1], [0, 0, 1, 1], [], []>} : vector<2x32xf32>, vector<32x32xf32>, vector<2x32xf32> -> vector<2x32xf32>
    %75 = arith.addf %73, %74 : vector<2x32xf32>
    %76 = math.tanh %75 : vector<2x32xf32>
    %77 = vector.extract_strided_slice %60 {offsets = [0, 3, 0], sizes = [2, 1, 32], strides = [1, 1, 1]} : vector<2x8x32xf32> to vector<2x1x32xf32>
    %78 = vector.shape_cast %77 : vector<2x1x32xf32> to vector<2x32xf32>
    %cst_37 = arith.constant dense<0.000000e+00> : vector<2x32xf32>
    %79 = tpu.matmul %76, %59, %cst_37 {dimension_numbers = #tpu.dot_dimension_numbers<[1], [0], [0], [1], [0, 0, 1, 1], [], []>} : vector<2x32xf32>, vector<32x32xf32>, vector<2x32xf32> -> vector<2x32xf32>
    %80 = arith.addf %78, %79 : vector<2x32xf32>
    %81 = math.tanh %80 : vector<2x32xf32>
    %82 = vector.extract_strided_slice %60 {offsets = [0, 4, 0], sizes = [2, 1, 32], strides = [1, 1, 1]} : vector<2x8x32xf32> to vector<2x1x32xf32>
    %83 = vector.shape_cast %82 : vector<2x1x32xf32> to vector<2x32xf32>
    %cst_38 = arith.constant dense<0.000000e+00> : vector<2x32xf32>
    %84 = tpu.matmul %81, %59, %cst_38 {dimension_numbers = #tpu.dot_dimension_numbers<[1], [0], [0], [1], [0, 0, 1, 1], [], []>} : vector<2x32xf32>, vector<32x32xf32>, vector<2x32xf32> -> vector<2x32xf32>
    %85 = arith.addf %83, %84 : vector<2x32xf32>
    %86 = math.tanh %85 : vector<2x32xf32>
    %87 = vector.extract_strided_slice %60 {offsets = [0, 5, 0], sizes = [2, 1, 32], strides = [1, 1, 1]} : vector<2x8x32xf32> to vector<2x1x32xf32>
    %88 = vector.shape_cast %87 : vector<2x1x32xf32> to vector<2x32xf32>
    %cst_39 = arith.constant dense<0.000000e+00> : vector<2x32xf32>
    %89 = tpu.matmul %86, %59, %cst_39 {dimension_numbers = #tpu.dot_dimension_numbers<[1], [0], [0], [1], [0, 0, 1, 1], [], []>} : vector<2x32xf32>, vector<32x32xf32>, vector<2x32xf32> -> vector<2x32xf32>
    %90 = arith.addf %88, %89 : vector<2x32xf32>
    %91 = math.tanh %90 : vector<2x32xf32>
    %92 = vector.extract_strided_slice %60 {offsets = [0, 6, 0], sizes = [2, 1, 32], strides = [1, 1, 1]} : vector<2x8x32xf32> to vector<2x1x32xf32>
    %93 = vector.shape_cast %92 : vector<2x1x32xf32> to vector<2x32xf32>
    %cst_40 = arith.constant dense<0.000000e+00> : vector<2x32xf32>
    %94 = tpu.matmul %91, %59, %cst_40 {dimension_numbers = #tpu.dot_dimension_numbers<[1], [0], [0], [1], [0, 0, 1, 1], [], []>} : vector<2x32xf32>, vector<32x32xf32>, vector<2x32xf32> -> vector<2x32xf32>
    %95 = arith.addf %93, %94 : vector<2x32xf32>
    %96 = math.tanh %95 : vector<2x32xf32>
    %97 = vector.extract_strided_slice %60 {offsets = [0, 7, 0], sizes = [2, 1, 32], strides = [1, 1, 1]} : vector<2x8x32xf32> to vector<2x1x32xf32>
    %98 = vector.shape_cast %97 : vector<2x1x32xf32> to vector<2x32xf32>
    %cst_41 = arith.constant dense<0.000000e+00> : vector<2x32xf32>
    %99 = tpu.matmul %96, %59, %cst_41 {dimension_numbers = #tpu.dot_dimension_numbers<[1], [0], [0], [1], [0, 0, 1, 1], [], []>} : vector<2x32xf32>, vector<32x32xf32>, vector<2x32xf32> -> vector<2x32xf32>
    %100 = arith.addf %98, %99 : vector<2x32xf32>
    %101 = math.tanh %100 : vector<2x32xf32>
    %c0_42 = arith.constant 0 : index
    %c0_43 = arith.constant 0 : index
    %102 = vector.load %arg11[%c0_42, %c0_43] : memref<32x4xf32, #tpu.memory_space<vmem>>, vector<32x4xf32>
    %cst_44 = arith.constant dense<0.000000e+00> : vector<2x4xf32>
    %103 = tpu.matmul %101, %102, %cst_44 {dimension_numbers = #tpu.dot_dimension_numbers<[1], [0], [0], [1], [0, 0, 1, 1], [], []>} : vector<2x32xf32>, vector<32x4xf32>, vector<2x4xf32> -> vector<2x4xf32>
    %c0_45 = arith.constant 0 : index
    %c0_46 = arith.constant 0 : index
    %104 = vector.load %arg12[%c0_45, %c0_46] : memref<1x4xf32, #tpu.memory_space<vmem>>, vector<1x4xf32>
    %105 = vector.broadcast %104 : vector<1x4xf32> to vector<2x4xf32>
    %106 = arith.addf %103, %105 : vector<2x4xf32>
    %107 = tpu.concatenate %23, %106 in 1 : vector<2x4xf32>, vector<2x4xf32> -> vector<2x8xf32>
    %c0_47 = arith.constant 0 : index
    %c0_48 = arith.constant 0 : index
    %108 = vector.load %arg13[%c0_47, %c0_48] : memref<2x8xf32, #tpu.memory_space<vmem>>, vector<2x8xf32>
    tpu.vector_store %arg13[%c0_47, %c0_48], %107 {strides = array<i32>} : memref<2x8xf32, #tpu.memory_space<vmem>>, vector<2x8xf32>,
    return
  }
}

</mosaic_0001>

<llo_original>
// kernel: _lambda_.1
$region0: #{_lambda_.1}
  #allocation0 [shape = 'u32[]', space=smem, size = 0x4, offset = 0x4, fixed_abs, tag = 'smem constant byte address 0x4 - core index']
  #allocation1 [shape = 'u32[144,128]{1,0:T(1,128)}', space=vmem, size = 0x12000, scoped, tag = 'internal scratch']
  %s0 = inlined_call_operand.vmem [shape: bf16[2,768], index: 0, kind: input, shape index: {}]
  %s1 = inlined_call_operand.vmem [shape: f32[16,3,256], index: 1, kind: input, shape index: {}]
  %s2 = inlined_call_operand.vmem [shape: bf16[768,64], index: 2, kind: input, shape index: {}]
  %s3 = inlined_call_operand.vmem [shape: f32[1,64], index: 3, kind: input, shape index: {}]
  %s4 = inlined_call_operand.vmem [shape: f32[64,4], index: 4, kind: input, shape index: {}]
  %s5 = inlined_call_operand.vmem [shape: f32[1,4], index: 5, kind: input, shape index: {}]
  %s6 = inlined_call_operand.vmem [shape: f32[3,1,16,1], index: 6, kind: input, shape index: {}]
  %s7 = inlined_call_operand.vmem [shape: f32[1,16,1], index: 7, kind: input, shape index: {}]
  %s8 = inlined_call_operand.vmem [shape: f32[16,32], index: 8, kind: input, shape index: {}]
  %s9 = inlined_call_operand.vmem [shape: f32[32,32], index: 9, kind: input, shape index: {}]
  %s10 = inlined_call_operand.vmem [shape: f32[1,32], index: 10, kind: input, shape index: {}]
  %s11 = inlined_call_operand.vmem [shape: f32[32,4], index: 11, kind: input, shape index: {}]
  %s12 = inlined_call_operand.vmem [shape: f32[1,4], index: 12, kind: input, shape index: {}]
  %s13 = inlined_call_operand.hbm [shape: f32[2,8], index: 13, kind: output, shape index: {}]
  %s14 = sld [smem:[#allocation0]]
  $region62: #{_lambda_.1} parent=0
    _
  %s16 = ssub.s32 1, %s14
  %s17 = scalar_select 0, %s16, %s14
  $region1: #{_lambda_.1} parent=0
    #allocation2 [shape = 'u8[1024]{0}', space=vmem, size = 0x400, scoped, tag = 'output window, operand 0, single buffered']
    #allocation3 [shape = 's32[1]{0}', space=sflag, size = 0x4, scoped, tag = 'scoped memory for _lambda_.1']
    %18 = vsyncpa [#allocation3], 0
    // Predicated region
    $region2: #{_lambda_.1} parent=1 // pred_check
      _
    $region3: #{_lambda_.1} parent=1 // pred_check_branch
      %20 = sbr.rel (0) target = $region5
    $region4: #{_lambda_.1} parent=1 // pred_region
      _
    $region5: #{_lambda_.1} parent=1 // pred_fallthru
      _
    // Predicated region
    $region6: #{_lambda_.1} parent=1 // pred_check
      _
    $region7: #{_lambda_.1} parent=1 // pred_check_branch
      %22 = sbr.rel (0) target = $region9
    $region8: #{_lambda_.1} parent=1 // pred_region
      _
    $region9: #{_lambda_.1} parent=1 // pred_fallthru
      _
    // Predicated region
    $region10: #{_lambda_.1} parent=1 // pred_check
      _
    $region11: #{_lambda_.1} parent=1 // pred_check_branch
      %24 = sbr.rel (0) target = $region13
    $region12: #{_lambda_.1} parent=1 // pred_region
      _
    $region13: #{_lambda_.1} parent=1 // pred_fallthru
      _
    // Predicated region
    $region14: #{_lambda_.1} parent=1 // pred_check
      _
    $region15: #{_lambda_.1} parent=1 // pred_check_branch
      %26 = sbr.rel (0) target = $region17
    $region16: #{_lambda_.1} parent=1 // pred_region
      _
    $region17: #{_lambda_.1} parent=1 // pred_fallthru
      _
    // Predicated region
    $region18: #{_lambda_.1} parent=1 // pred_check
      _
    $region19: #{_lambda_.1} parent=1 // pred_check_branch
      %28 = sbr.rel (0) target = $region21
    $region20: #{_lambda_.1} parent=1 // pred_region
      _
    $region21: #{_lambda_.1} parent=1 // pred_fallthru
      _
    // Predicated region
    $region22: #{_lambda_.1} parent=1 // pred_check
      _
    $region23: #{_lambda_.1} parent=1 // pred_check_branch
      %30 = sbr.rel (0) target = $region25
    $region24: #{_lambda_.1} parent=1 // pred_region
      _
    $region25: #{_lambda_.1} parent=1 // pred_fallthru
      _
    // Predicated region
    $region26: #{_lambda_.1} parent=1 // pred_check
      _
    $region27: #{_lambda_.1} parent=1 // pred_check_branch
      %32 = sbr.rel (0) target = $region29
    $region28: #{_lambda_.1} parent=1 // pred_region
      _
    $region29: #{_lambda_.1} parent=1 // pred_fallthru
      _
    // Predicated region
    $region30: #{_lambda_.1} parent=1 // pred_check
      _
    $region31: #{_lambda_.1} parent=1 // pred_check_branch
      %34 = sbr.rel (0) target = $region33
    $region32: #{_lambda_.1} parent=1 // pred_region
      _
    $region33: #{_lambda_.1} parent=1 // pred_fallthru
      _
    // Predicated region
    $region34: #{_lambda_.1} parent=1 // pred_check
      _
    $region35: #{_lambda_.1} parent=1 // pred_check_branch
      %36 = sbr.rel (0) target = $region37
    $region36: #{_lambda_.1} parent=1 // pred_region
      _
    $region37: #{_lambda_.1} parent=1 // pred_fallthru
      _
    // Predicated region
    $region38: #{_lambda_.1} parent=1 // pred_check
      _
    $region39: #{_lambda_.1} parent=1 // pred_check_branch
      %38 = sbr.rel (0) target = $region41
    $region40: #{_lambda_.1} parent=1 // pred_region
      _
    $region41: #{_lambda_.1} parent=1 // pred_fallthru
      _
    // Predicated region
    $region42: #{_lambda_.1} parent=1 // pred_check
      _
    $region43: #{_lambda_.1} parent=1 // pred_check_branch
      %40 = sbr.rel (0) target = $region45
    $region44: #{_lambda_.1} parent=1 // pred_region
      _
    $region45: #{_lambda_.1} parent=1 // pred_fallthru
      _
    // Predicated region
    $region46: #{_lambda_.1} parent=1 // pred_check
      _
    $region47: #{_lambda_.1} parent=1 // pred_check_branch
      %42 = sbr.rel (0) target = $region49
    $region48: #{_lambda_.1} parent=1 // pred_region
      _
    $region49: #{_lambda_.1} parent=1 // pred_fallthru
      _
    // Predicated region
    $region50: #{_lambda_.1} parent=1 // pred_check
      _
    $region51: #{_lambda_.1} parent=1 // pred_check_branch
      %44 = sbr.rel (0) target = $region53
    $region52: #{_lambda_.1} parent=1 // pred_region
      _
    $region53: #{_lambda_.1} parent=1 // pred_fallthru
      _
    %v46 = vld [vmem:[%s0] sm:$0x3f]
    %v47 = vld [vmem:[%s2] sm:$0xf]
    %v48 = vld [vmem:[%s2 + $0x4] sm:$0xf]
    %v49 = vld [vmem:[%s2 + $0x8] sm:$0xf]
    %v50 = vld [vmem:[%s2 + $0xc] sm:$0xf]
    %v51 = vld [vmem:[%s2 + $0x10] sm:$0xf]
    %v52 = vld [vmem:[%s2 + $0x14] sm:$0xf]
    %v53 = vld [vmem:[%s2 + $0x18] sm:$0xf]
    %v54 = vld [vmem:[%s2 + $0x1c] sm:$0xf]
    %v55 = vld [vmem:[%s2 + $0x20] sm:$0xf]
    %v56 = vld [vmem:[%s2 + $0x24] sm:$0xf]
    %v57 = vld [vmem:[%s2 + $0x28] sm:$0xf]
    %v58 = vld [vmem:[%s2 + $0x2c] sm:$0xf]
    %v59 = vld [vmem:[%s2 + $0x30] sm:$0xf]
    %v60 = vld [vmem:[%s2 + $0x34] sm:$0xf]
    %v61 = vld [vmem:[%s2 + $0x38] sm:$0xf]
    %v62 = vld [vmem:[%s2 + $0x3c] sm:$0xf]
    %v63 = vld [vmem:[%s2 + $0x40] sm:$0xf]
    %v64 = vld [vmem:[%s2 + $0x44] sm:$0xf]
    %v65 = vld [vmem:[%s2 + $0x48] sm:$0xf]
    %v66 = vld [vmem:[%s2 + $0x4c] sm:$0xf]
    %v67 = vld [vmem:[%s2 + $0x50] sm:$0xf]
    %v68 = vld [vmem:[%s2 + $0x54] sm:$0xf]
    %v69 = vld [vmem:[%s2 + $0x58] sm:$0xf]
    %v70 = vld [vmem:[%s2 + $0x5c] sm:$0xf]
    %v71 = vld [vmem:[%s2 + $0x60] sm:$0xf]
    %v72 = vld [vmem:[%s2 + $0x64] sm:$0xf]
    %v73 = vld [vmem:[%s2 + $0x68] sm:$0xf]
    %v74 = vld [vmem:[%s2 + $0x6c] sm:$0xf]
    %v75 = vld [vmem:[%s2 + $0x70] sm:$0xf]
    %v76 = vld [vmem:[%s2 + $0x74] sm:$0xf]
    %v77 = vld [vmem:[%s2 + $0x78] sm:$0xf]
    %v78 = vld [vmem:[%s2 + $0x7c] sm:$0xf]
    %v79 = vld [vmem:[%s2 + $0x80] sm:$0xf]
    %v80 = vld [vmem:[%s2 + $0x84] sm:$0xf]
    %v81 = vld [vmem:[%s2 + $0x88] sm:$0xf]
    %v82 = vld [vmem:[%s2 + $0x8c] sm:$0xf]
    %v83 = vld [vmem:[%s2 + $0x90] sm:$0xf]
    %v84 = vld [vmem:[%s2 + $0x94] sm:$0xf]
    %v85 = vld [vmem:[%s2 + $0x98] sm:$0xf]
    %v86 = vld [vmem:[%s2 + $0x9c] sm:$0xf]
    %v87 = vld [vmem:[%s2 + $0xa0] sm:$0xf]
    %v88 = vld [vmem:[%s2 + $0xa4] sm:$0xf]
    %v89 = vld [vmem:[%s2 + $0xa8] sm:$0xf]
    %v90 = vld [vmem:[%s2 + $0xac] sm:$0xf]
    %v91 = vld [vmem:[%s2 + $0xb0] sm:$0xf]
    %v92 = vld [vmem:[%s2 + $0xb4] sm:$0xf]
    %v93 = vld [vmem:[%s2 + $0xb8] sm:$0xf]
    %v94 = vld [vmem:[%s2 + $0xbc] sm:$0xf]
    %v95 = vld [vmem:[%s2 + $0xc0] sm:$0xf]
    %v96 = vld [vmem:[%s2 + $0xc4] sm:$0xf]
    %v97 = vld [vmem:[%s2 + $0xc8] sm:$0xf]
    %v98 = vld [vmem:[%s2 + $0xcc] sm:$0xf]
    %v99 = vld [vmem:[%s2 + $0xd0] sm:$0xf]
    %v100 = vld [vmem:[%s2 + $0xd4] sm:$0xf]
    %v101 = vld [vmem:[%s2 + $0xd8] sm:$0xf]
    %v102 = vld [vmem:[%s2 + $0xdc] sm:$0xf]
    %v103 = vld [vmem:[%s2 + $0xe0] sm:$0xf]
    %v104 = vld [vmem:[%s2 + $0xe4] sm:$0xf]
    %v105 = vld [vmem:[%s2 + $0xe8] sm:$0xf]
    %v106 = vld [vmem:[%s2 + $0xec] sm:$0xf]
    %v107 = vld [vmem:[%s2 + $0xf0] sm:$0xf]
    %v108 = vld [vmem:[%s2 + $0xf4] sm:$0xf]
    %v109 = vld [vmem:[%s2 + $0xf8] sm:$0xf]
    %v110 = vld [vmem:[%s2 + $0xfc] sm:$0xf]
    %v111 = vld [vmem:[%s2 + $0x100] sm:$0xf]
    %v112 = vld [vmem:[%s2 + $0x104] sm:$0xf]
    %v113 = vld [vmem:[%s2 + $0x108] sm:$0xf]
    %v114 = vld [vmem:[%s2 + $0x10c] sm:$0xf]
    %v115 = vld [vmem:[%s2 + $0x110] sm:$0xf]
    %v116 = vld [vmem:[%s2 + $0x114] sm:$0xf]
    %v117 = vld [vmem:[%s2 + $0x118] sm:$0xf]
    %v118 = vld [vmem:[%s2 + $0x11c] sm:$0xf]
    %v119 = vld [vmem:[%s2 + $0x120] sm:$0xf]
    %v120 = vld [vmem:[%s2 + $0x124] sm:$0xf]
    %v121 = vld [vmem:[%s2 + $0x128] sm:$0xf]
    %v122 = vld [vmem:[%s2 + $0x12c] sm:$0xf]
    %v123 = vld [vmem:[%s2 + $0x130] sm:$0xf]
    %v124 = vld [vmem:[%s2 + $0x134] sm:$0xf]
    %v125 = vld [vmem:[%s2 + $0x138] sm:$0xf]
    %v126 = vld [vmem:[%s2 + $0x13c] sm:$0xf]
    %v127 = vld [vmem:[%s2 + $0x140] sm:$0xf]
    %v128 = vld [vmem:[%s2 + $0x144] sm:$0xf]
    %v129 = vld [vmem:[%s2 + $0x148] sm:$0xf]
    %v130 = vld [vmem:[%s2 + $0x14c] sm:$0xf]
    %v131 = vld [vmem:[%s2 + $0x150] sm:$0xf]
    %v132 = vld [vmem:[%s2 + $0x154] sm:$0xf]
    %v133 = vld [vmem:[%s2 + $0x158] sm:$0xf]
    %v134 = vld [vmem:[%s2 + $0x15c] sm:$0xf]
    %v135 = vld [vmem:[%s2 + $0x160] sm:$0xf]
    %v136 = vld [vmem:[%s2 + $0x164] sm:$0xf]
    %v137 = vld [vmem:[%s2 + $0x168] sm:$0xf]
    %v138 = vld [vmem:[%s2 + $0x16c] sm:$0xf]
    %v139 = vld [vmem:[%s2 + $0x170] sm:$0xf]
    %v140 = vld [vmem:[%s2 + $0x174] sm:$0xf]
    %v141 = vld [vmem:[%s2 + $0x178] sm:$0xf]
    %v142 = vld [vmem:[%s2 + $0x17c] sm:$0xf]
    %v143 = vld [vmem:[%s3] sm:$0x1]
    %v145 = vlaneseq
    %v146 = vshrl.u32 %v145, 7
    %v147 = vsub.s32 0, %v146
    %v148 = vrot.slane %v143, %v147
    %v151 = vcombine.high %v46, %v46
    %v153 = vunpack.c.l.s4 1966171168
    %v154 = vunpack.c.0.s8 %v153
    %v155 = vlaneseq
    %v156 = vshrl.u32 %v155, 7
    %v157 = vsub.s32 %v154, %v156
    %v158 = vrot.slane %v46, %v157
    %v160 = vunpack.c.l.s4 1966171168
    %v161 = vunpack.c.0.s8 %v160
    %v162 = vlaneseq
    %v163 = vshrl.u32 %v162, 7
    %v164 = vsub.s32 %v161, %v163
    %v165 = vrot.slane %v151, %v164
    %v166 = vcombine.high %v158, %v158
    %v167 = vcombine.high %v165, %v165
    %v169 = vunpack.c.l.s4 1966171168
    %v170 = vunpack.c.0.s8 %v169
    %v171 = vlaneseq
    %v172 = vshrl.u32 %v171, 7
    %v173 = vsub.s32 %v170, %v172
    %v174 = vrot.slane %v158, %v173
    %v176 = vunpack.c.l.s4 1966171168
    %v177 = vunpack.c.0.s8 %v176
    %v178 = vlaneseq
    %v179 = vshrl.u32 %v178, 7
    %v180 = vsub.s32 %v177, %v179
    %v181 = vrot.slane %v165, %v180
    %v183 = vunpack.c.l.s4 1966171168
    %v184 = vunpack.c.0.s8 %v183
    %v185 = vlaneseq
    %v186 = vshrl.u32 %v185, 7
    %v187 = vsub.s32 %v184, %v186
    %v188 = vrot.slane %v166, %v187
    %v190 = vunpack.c.l.s4 1966171168
    %v191 = vunpack.c.0.s8 %v190
    %v192 = vlaneseq
    %v193 = vshrl.u32 %v192, 7
    %v194 = vsub.s32 %v191, %v193
    %v195 = vrot.slane %v167, %v194
    %v196 = vcombine.high %v174, %v174
    %v197 = vcombine.high %v188, %v188
    %v300 = vunpack.c.l.b16 %v47
    %v301 = vunpack.c.l.b16 %v48
    %v302 = vunpack.c.l.b16 %v49
    %v303 = vunpack.c.l.b16 %v50
    %v304 = vunpack.c.l.b16 %v51
    %v305 = vunpack.c.l.b16 %v52
    %v306 = vunpack.c.l.b16 %v53
    %v307 = vunpack.c.l.b16 %v54
    %v308 = vunpack.c.l.b16 %v55
    %v309 = vunpack.c.l.b16 %v56
    %v310 = vunpack.c.l.b16 %v57
    %v311 = vunpack.c.l.b16 %v58
    %v312 = vunpack.c.l.b16 %v59
    %v313 = vunpack.c.l.b16 %v60
    %v314 = vunpack.c.l.b16 %v61
    %v315 = vunpack.c.l.b16 %v62
    %v316 = vunpack.c.l.b16 %v63
    %v317 = vunpack.c.l.b16 %v64
    %v318 = vunpack.c.l.b16 %v65
    %v319 = vunpack.c.l.b16 %v66
    %v320 = vunpack.c.l.b16 %v67
    %v321 = vunpack.c.l.b16 %v68
    %v322 = vunpack.c.l.b16 %v69
    %v323 = vunpack.c.l.b16 %v70
    %v324 = vunpack.c.l.b16 %v71
    %v325 = vunpack.c.l.b16 %v72
    %v326 = vunpack.c.l.b16 %v73
    %v327 = vunpack.c.l.b16 %v74
    %v328 = vunpack.c.l.b16 %v75
    %v329 = vunpack.c.l.b16 %v76
    %v330 = vunpack.c.l.b16 %v77
    %v331 = vunpack.c.l.b16 %v78
    %v332 = vunpack.c.l.b16 %v79
    %v333 = vunpack.c.l.b16 %v80
    %v334 = vunpack.c.l.b16 %v81
    %v335 = vunpack.c.l.b16 %v82
    %v336 = vunpack.c.l.b16 %v83
    %v337 = vunpack.c.l.b16 %v84
    %v338 = vunpack.c.l.b16 %v85
    %v339 = vunpack.c.l.b16 %v86
    %v340 = vunpack.c.l.b16 %v87
    %v341 = vunpack.c.l.b16 %v88
    %v342 = vunpack.c.l.b16 %v89
    %v343 = vunpack.c.l.b16 %v90
    %v344 = vunpack.c.l.b16 %v91
    %v345 = vunpack.c.l.b16 %v92
    %v346 = vunpack.c.l.b16 %v93
    %v347 = vunpack.c.l.b16 %v94
    %v348 = vunpack.c.l.b16 %v95
    %v349 = vunpack.c.l.b16 %v96
    %v350 = vunpack.c.l.b16 %v97
    %v351 = vunpack.c.l.b16 %v98
    %v352 = vunpack.c.l.b16 %v99
    %v353 = vunpack.c.l.b16 %v100
    %v354 = vunpack.c.l.b16 %v101
    %v355 = vunpack.c.l.b16 %v102
    %v356 = vunpack.c.l.b16 %v103
    %v357 = vunpack.c.l.b16 %v104
    %v358 = vunpack.c.l.b16 %v105
    %v359 = vunpack.c.l.b16 %v106
    %v360 = vunpack.c.l.b16 %v107
    %v361 = vunpack.c.l.b16 %v108
    %v362 = vunpack.c.l.b16 %v109
    %v363 = vunpack.c.l.b16 %v110
    %v364 = vunpack.c.l.b16 %v111
    %v365 = vunpack.c.l.b16 %v112
    %v366 = vunpack.c.l.b16 %v113
    %v367 = vunpack.c.l.b16 %v114
    %v368 = vunpack.c.l.b16 %v115
    %v369 = vunpack.c.l.b16 %v116
    %v370 = vunpack.c.l.b16 %v117
    %v371 = vunpack.c.l.b16 %v118
    %v372 = vunpack.c.l.b16 %v119
    %v373 = vunpack.c.l.b16 %v120
    %v374 = vunpack.c.l.b16 %v121
    %v375 = vunpack.c.l.b16 %v122
    %v376 = vunpack.c.l.b16 %v123
    %v377 = vunpack.c.l.b16 %v124
    %v378 = vunpack.c.l.b16 %v125
    %v379 = vunpack.c.l.b16 %v126
    %v380 = vunpack.c.l.b16 %v127
    %v381 = vunpack.c.l.b16 %v128
    %v382 = vunpack.c.l.b16 %v129
    %v383 = vunpack.c.l.b16 %v130
    %v384 = vunpack.c.l.b16 %v131
    %v385 = vunpack.c.l.b16 %v132
    %v386 = vunpack.c.l.b16 %v133
    %v387 = vunpack.c.l.b16 %v134
    %v388 = vunpack.c.l.b16 %v135
    %v389 = vunpack.c.l.b16 %v136
    %v390 = vunpack.c.l.b16 %v137
    %v391 = vunpack.c.l.b16 %v138
    %v392 = vunpack.c.l.b16 %v139
    %v393 = vunpack.c.l.b16 %v140
    %v394 = vunpack.c.l.b16 %v141
    %v395 = vunpack.c.l.b16 %v142
    %v396 = vpack.c.b16 %v301, %v300
    %v397 = vpack.c.b16 %v303, %v302
    %v398 = vpack.c.b16 %v305, %v304
    %v399 = vpack.c.b16 %v307, %v306
    %v400 = vpack.c.b16 %v309, %v308
    %v401 = vpack.c.b16 %v311, %v310
    %v402 = vpack.c.b16 %v313, %v312
    %v403 = vpack.c.b16 %v315, %v314
    %v404 = vpack.c.b16 %v317, %v316
    %v405 = vpack.c.b16 %v319, %v318
    %v406 = vpack.c.b16 %v321, %v320
    %v407 = vpack.c.b16 %v323, %v322
    %v408 = vpack.c.b16 %v325, %v324
    %v409 = vpack.c.b16 %v327, %v326
    %v410 = vpack.c.b16 %v329, %v328
    %v411 = vpack.c.b16 %v331, %v330
    %v412 = vpack.c.b16 %v333, %v332
    %v413 = vpack.c.b16 %v335, %v334
    %v414 = vpack.c.b16 %v337, %v336
    %v415 = vpack.c.b16 %v339, %v338
    %v416 = vpack.c.b16 %v341, %v340
    %v417 = vpack.c.b16 %v343, %v342
    %v418 = vpack.c.b16 %v345, %v344
    %v419 = vpack.c.b16 %v347, %v346
    %v420 = vpack.c.b16 %v349, %v348
    %v421 = vpack.c.b16 %v351, %v350
    %v422 = vpack.c.b16 %v353, %v352
    %v423 = vpack.c.b16 %v355, %v354
    %v424 = vpack.c.b16 %v357, %v356
    %v425 = vpack.c.b16 %v359, %v358
    %v426 = vpack.c.b16 %v361, %v360
    %v427 = vpack.c.b16 %v363, %v362
    %v428 = vpack.c.b16 %v365, %v364
    %v429 = vpack.c.b16 %v367, %v366
    %v430 = vpack.c.b16 %v369, %v368
    %v431 = vpack.c.b16 %v371, %v370
    %v432 = vpack.c.b16 %v373, %v372
    %v433 = vpack.c.b16 %v375, %v374
    %v434 = vpack.c.b16 %v377, %v376
    %v435 = vpack.c.b16 %v379, %v378
    %v436 = vpack.c.b16 %v381, %v380
    %v437 = vpack.c.b16 %v383, %v382
    %v438 = vpack.c.b16 %v385, %v384
    %v439 = vpack.c.b16 %v387, %v386
    %v440 = vpack.c.b16 %v389, %v388
    %v441 = vpack.c.b16 %v391, %v390
    %v442 = vpack.c.b16 %v393, %v392
    %v443 = vpack.c.b16 %v395, %v394
    %492 = vmatprep.subr.bf16.mxu0 0
    %493 = vmatpush1.bf16.msra.mxu0 %v403
    %494 = vmatprep.subr.bf16.mxu0 0
    %495 = vmatpush1.bf16.msra.mxu0 %v402
    %496 = vmatprep.subr.bf16.mxu0 0
    %497 = vmatpush1.bf16.msra.mxu0 %v401
    %498 = vmatprep.subr.bf16.mxu0 0
    %499 = vmatpush1.bf16.msra.mxu0 %v400
    %500 = vmatprep.subr.bf16.mxu0 0
    %501 = vmatpush1.bf16.msra.mxu0 %v399
    %502 = vmatprep.subr.bf16.mxu0 0
    %503 = vmatpush1.bf16.msra.mxu0 %v398
    %504 = vmatprep.subr.bf16.mxu0 0
    %505 = vmatpush1.bf16.msra.mxu0 %v397
    %506 = vmatprep.subr.bf16.mxu0 0
    %507 = vmatpush1.bf16.msra.mxu0 %v396
    %508 = vmatprep.subr.bf16.mxu0 0
    %509 = vmatpush2.bf16.msra.mxu0 %v411
    %510 = vmatprep.subr.bf16.mxu0 0
    %511 = vmatpush2.bf16.msra.mxu0 %v410
    %512 = vmatprep.subr.bf16.mxu0 0
    %513 = vmatpush2.bf16.msra.mxu0 %v409
    %514 = vmatprep.subr.bf16.mxu0 0
    %515 = vmatpush2.bf16.msra.mxu0 %v408
    %516 = vmatprep.subr.bf16.mxu0 0
    %517 = vmatpush2.bf16.msra.mxu0 %v407
    %518 = vmatprep.subr.bf16.mxu0 0
    %519 = vmatpush2.bf16.msra.mxu0 %v406
    %520 = vmatprep.subr.bf16.mxu0 0
    %521 = vmatpush2.bf16.msra.mxu0 %v405
    %522 = vmatprep.subr.bf16.mxu0 0
    %523 = vmatpush2.bf16.msra.mxu0 %v404
    %524 = vmatprep.mubr.bf16.mxu0 %v188
    %525 = vmatmul.mubr.bf16.gmra.mxu0 %v174
    %v526 = vpop.f32.mrf.mxu0
    %v527 = vadd.f32 %v148, %v526
    %v528 = vpop.f32.mrf.mxu0
    %v529 = vpop.f32.mrf.mxu0
    %v530 = vpop.f32.mrf.mxu0
    %531 = vdwg.mxu0
    %532 = vmatprep.subr.bf16.mxu0 0
    %533 = vmatpush1.bf16.msra.mxu0 %v419
    %534 = vmatprep.subr.bf16.mxu0 0
    %535 = vmatpush1.bf16.msra.mxu0 %v418
    %536 = vmatprep.subr.bf16.mxu0 0
    %537 = vmatpush1.bf16.msra.mxu0 %v417
    %538 = vmatprep.subr.bf16.mxu0 0
    %539 = vmatpush1.bf16.msra.mxu0 %v416
    %540 = vmatprep.subr.bf16.mxu0 0
    %541 = vmatpush1.bf16.msra.mxu0 %v415
    %542 = vmatprep.subr.bf16.mxu0 0
    %543 = vmatpush1.bf16.msra.mxu0 %v414
    %544 = vmatprep.subr.bf16.mxu0 0
    %545 = vmatpush1.bf16.msra.mxu0 %v413
    %546 = vmatprep.subr.bf16.mxu0 0
    %547 = vmatpush1.bf16.msra.mxu0 %v412
    %548 = vmatprep.subr.bf16.mxu0 0
    %549 = vmatpush2.bf16.msra.mxu0 %v427
    %550 = vmatprep.subr.bf16.mxu0 0
    %551 = vmatpush2.bf16.msra.mxu0 %v426
    %552 = vmatprep.subr.bf16.mxu0 0
    %553 = vmatpush2.bf16.msra.mxu0 %v425
    %554 = vmatprep.subr.bf16.mxu0 0
    %555 = vmatpush2.bf16.msra.mxu0 %v424
    %556 = vmatprep.subr.bf16.mxu0 0
    %557 = vmatpush2.bf16.msra.mxu0 %v423
    %558 = vmatprep.subr.bf16.mxu0 0
    %559 = vmatpush2.bf16.msra.mxu0 %v422
    %560 = vmatprep.subr.bf16.mxu0 0
    %561 = vmatpush2.bf16.msra.mxu0 %v421
    %562 = vmatprep.subr.bf16.mxu0 0
    %563 = vmatpush2.bf16.msra.mxu0 %v420
    %564 = vmatprep.mubr.bf16.mxu0 %v197
    %565 = vmatmul.mubr.bf16.gmra.mxu0 %v196
    %v566 = vpop.f32.mrf.mxu0
    %v567 = vadd.f32 %v527, %v566
    %v568 = vpop.f32.mrf.mxu0
    %v569 = vpop.f32.mrf.mxu0
    %v570 = vpop.f32.mrf.mxu0
    %571 = vdwg.mxu0
    %572 = vmatprep.subr.bf16.mxu0 0
    %573 = vmatpush1.bf16.msra.mxu0 %v435
    %574 = vmatprep.subr.bf16.mxu0 0
    %575 = vmatpush1.bf16.msra.mxu0 %v434
    %576 = vmatprep.subr.bf16.mxu0 0
    %577 = vmatpush1.bf16.msra.mxu0 %v433
    %578 = vmatprep.subr.bf16.mxu0 0
    %579 = vmatpush1.bf16.msra.mxu0 %v432
    %580 = vmatprep.subr.bf16.mxu0 0
    %581 = vmatpush1.bf16.msra.mxu0 %v431
    %582 = vmatprep.subr.bf16.mxu0 0
    %583 = vmatpush1.bf16.msra.mxu0 %v430
    %584 = vmatprep.subr.bf16.mxu0 0
    %585 = vmatpush1.bf16.msra.mxu0 %v429
    %586 = vmatprep.subr.bf16.mxu0 0
    %587 = vmatpush1.bf16.msra.mxu0 %v428
    %588 = vmatprep.subr.bf16.mxu0 0
    %589 = vmatpush2.bf16.msra.mxu0 %v443
    %590 = vmatprep.subr.bf16.mxu0 0
    %591 = vmatpush2.bf16.msra.mxu0 %v442
    %592 = vmatprep.subr.bf16.mxu0 0
    %593 = vmatpush2.bf16.msra.mxu0 %v441
    %594 = vmatprep.subr.bf16.mxu0 0
    %595 = vmatpush2.bf16.msra.mxu0 %v440
    %596 = vmatprep.subr.bf16.mxu0 0
    %597 = vmatpush2.bf16.msra.mxu0 %v439
    %598 = vmatprep.subr.bf16.mxu0 0
    %599 = vmatpush2.bf16.msra.mxu0 %v438
    %600 = vmatprep.subr.bf16.mxu0 0
    %601 = vmatpush2.bf16.msra.mxu0 %v437
    %602 = vmatprep.subr.bf16.mxu0 0
    %603 = vmatpush2.bf16.msra.mxu0 %v436
    %604 = vmatprep.mubr.bf16.mxu0 %v195
    %605 = vmatmul.mubr.bf16.gmra.mxu0 %v181
    %v606 = vpop.f32.mrf.mxu0
    %v607 = vadd.f32 %v567, %v606
    %v608 = vpop.f32.mrf.mxu0
    %v609 = vpop.f32.mrf.mxu0
    %v610 = vpop.f32.mrf.mxu0
    %611 = vdwg.mxu0
    %v612 = vmax.f32 %v607, 0.0
    %v613 = vld [vmem:[%s4] sm:$0xff]
    %v614 = vld [vmem:[%s4 + $0x8] sm:$0xff]
    %v615 = vld [vmem:[%s4 + $0x10] sm:$0xff]
    %v616 = vld [vmem:[%s4 + $0x18] sm:$0xff]
    %v617 = vld [vmem:[%s4 + $0x20] sm:$0xff]
    %v618 = vld [vmem:[%s4 + $0x28] sm:$0xff]
    %v619 = vld [vmem:[%s4 + $0x30] sm:$0xff]
    %v620 = vld [vmem:[%s4 + $0x38] sm:$0xff]
    %v621 = vld [vmem:[%s5] sm:$0x1]
    %v623 = vlaneseq
    %v624 = vshrl.u32 %v623, 7
    %v625 = vsub.s32 0, %v624
    %v626 = vrot.slane %v621, %v625
    %vm628 = vcmask 523264
    %v630 = vsel %vm628, %v612, 0
    %632 = vmatprep.subr.mxu0 0.0
    %633 = vmatpush1.msra.mxu0 0.0
    %634 = vmatprep.subr.mxu0 0.0
    %635 = vmatpush1.msra.mxu0 0.0
    %636 = vmatprep.subr.mxu0 0.0
    %637 = vmatpush1.msra.mxu0 0.0
    %638 = vmatprep.subr.mxu0 0.0
    %639 = vmatpush1.msra.mxu0 0.0
    %640 = vmatprep.subr.mxu0 0.0
    %641 = vmatpush1.msra.mxu0 0.0
    %642 = vmatprep.subr.mxu0 0.0
    %643 = vmatpush1.msra.mxu0 0.0
    %644 = vmatprep.subr.mxu0 0.0
    %645 = vmatpush1.msra.mxu0 0.0
    %646 = vmatprep.subr.mxu0 0.0
    %647 = vmatpush1.msra.mxu0 0.0
    %648 = vmatprep.subr.mxu0 0.0
    %649 = vmatpush1.msra.mxu0 %v620
    %650 = vmatprep.subr.mxu0 0.0
    %651 = vmatpush1.msra.mxu0 %v619
    %652 = vmatprep.subr.mxu0 0.0
    %653 = vmatpush1.msra.mxu0 %v618
    %654 = vmatprep.subr.mxu0 0.0
    %655 = vmatpush1.msra.mxu0 %v617
    %656 = vmatprep.subr.mxu0 0.0
    %657 = vmatpush1.msra.mxu0 %v616
    %658 = vmatprep.subr.mxu0 0.0
    %659 = vmatpush1.msra.mxu0 %v615
    %660 = vmatprep.subr.mxu0 0.0
    %661 = vmatpush1.msra.mxu0 %v614
    %662 = vmatprep.subr.mxu0 0.0
    %663 = vmatpush1.msra.mxu0 %v613
    %664 = vmatprep.subr.mxu0 0.0
    %665 = vmatpush2.msra.mxu0 0.0
    %666 = vmatprep.subr.mxu0 0.0
    %667 = vmatpush2.msra.mxu0 0.0
    %668 = vmatprep.subr.mxu0 0.0
    %669 = vmatpush2.msra.mxu0 0.0
    %670 = vmatprep.subr.mxu0 0.0
    %671 = vmatpush2.msra.mxu0 0.0
    %672 = vmatprep.subr.mxu0 0.0
    %673 = vmatpush2.msra.mxu0 0.0
    %674 = vmatprep.subr.mxu0 0.0
    %675 = vmatpush2.msra.mxu0 0.0
    %676 = vmatprep.subr.mxu0 0.0
    %677 = vmatpush2.msra.mxu0 0.0
    %678 = vmatprep.subr.mxu0 0.0
    %679 = vmatpush2.msra.mxu0 0.0
    %680 = vmatprep.subr.mxu0 0.0
    %681 = vmatpush2.msra.mxu0 0.0
    %682 = vmatprep.subr.mxu0 0.0
    %683 = vmatpush2.msra.mxu0 0.0
    %684 = vmatprep.subr.mxu0 0.0
    %685 = vmatpush2.msra.mxu0 0.0
    %686 = vmatprep.subr.mxu0 0.0
    %687 = vmatpush2.msra.mxu0 0.0
    %688 = vmatprep.subr.mxu0 0.0
    %689 = vmatpush2.msra.mxu0 0.0
    %690 = vmatprep.subr.mxu0 0.0
    %691 = vmatpush2.msra.mxu0 0.0
    %692 = vmatprep.subr.mxu0 0.0
    %693 = vmatpush2.msra.mxu0 0.0
    %694 = vmatprep.subr.mxu0 0.0
    %695 = vmatpush2.msra.mxu0 0.0
    %696 = vmatprep.mubr.f32.mxu0 0.0
    %697 = vmatmul.mubr.f32.gmra.mxu0 %v630
    %v698 = vpop.f32.mrf.mxu0
    %v699 = vadd.f32 %v626, %v698
    %v700 = vpop.f32.mrf.mxu0
    %701 = vdwg.mxu0
    %vm702 = vcmask 25600
    %v703 = vsel %vm702, %v699, -inf
    %704 = vmax.xlane.f32.xlu0 %v703
    %v705 = vpop.xlane.xlu0 %704
    %v706 = vsub.f32 %v699, %v705
    %v707 = vmul.f32 %v706, 1.442695
    %v708 = vpow.pop %v707
    %v709 = vsel %vm702, %v708, 0.0
    %710 = vadd.xlane.f32.xlu0 %v709
    %v711 = vpop.xlane.xlu0 %710
    %v712 = vsub.f32 %v711, %v708
    %v713 = vlog2.pop %v712
    %v714 = vmul.f32 %v713, 0.6931472
    %v715 = vsub.f32 %v706, %v714
    %v716 = vld [vmem:[%s1] sm:$0x77]
    %v717 = vld [vmem:[%s1 + $0x8] sm:$0x77]
    %v718 = vld [vmem:[%s1 + $0x10] sm:$0x77]
    %v719 = vld [vmem:[%s1 + $0x18] sm:$0x77]
    %v720 = vld [vmem:[%s1 + $0x20] sm:$0x77]
    %v721 = vld [vmem:[%s1 + $0x28] sm:$0x77]
    %v722 = vld [vmem:[%s1 + $0x30] sm:$0x77]
    %v723 = vld [vmem:[%s1 + $0x38] sm:$0x77]
    %v724 = vld [vmem:[%s1 + $0x40] sm:$0x77]
    %v725 = vld [vmem:[%s1 + $0x48] sm:$0x77]
    %v726 = vld [vmem:[%s1 + $0x50] sm:$0x77]
    %v727 = vld [vmem:[%s1 + $0x58] sm:$0x77]
    %v728 = vld [vmem:[%s1 + $0x60] sm:$0x77]
    %v729 = vld [vmem:[%s1 + $0x68] sm:$0x77]
    %v730 = vld [vmem:[%s1 + $0x70] sm:$0x77]
    %v731 = vld [vmem:[%s1 + $0x78] sm:$0x77]
    %v732 = vld [vmem:[%s6] sm:$0xff]
    %v733 = vld [vmem:[%s6 + $0x8] sm:$0xff]
    %v734 = vld [vmem:[%s6 + $0x10] sm:$0xff]
    %v735 = vld [vmem:[%s6 + $0x18] sm:$0xff]
    %v736 = vld [vmem:[%s6 + $0x20] sm:$0xff]
    %v737 = vld [vmem:[%s6 + $0x28] sm:$0xff]
    %v754 = vlaneseq
    %v755 = vshrl.u32 %v754, 7
    %v756 = vsub.s32 0, %v755
    %v757 = vrot.slane %v716, %v756
    %v758 = vlaneseq
    %v759 = vshrl.u32 %v758, 7
    %v760 = vsub.s32 4, %v759
    %v761 = vrot.slane %v716, %v760
    %v762 = vlaneseq
    %v763 = vshrl.u32 %v762, 7
    %v764 = vsub.s32 0, %v763
    %v765 = vrot.slane %v717, %v764
    %v766 = vlaneseq
    %v767 = vshrl.u32 %v766, 7
    %v768 = vsub.s32 4, %v767
    %v769 = vrot.slane %v717, %v768
    %v770 = vlaneseq
    %v771 = vshrl.u32 %v770, 7
    %v772 = vsub.s32 0, %v771
    %v773 = vrot.slane %v718, %v772
    %v774 = vlaneseq
    %v775 = vshrl.u32 %v774, 7
    %v776 = vsub.s32 4, %v775
    %v777 = vrot.slane %v718, %v776
    %v778 = vlaneseq
    %v779 = vshrl.u32 %v778, 7
    %v780 = vsub.s32 0, %v779
    %v781 = vrot.slane %v719, %v780
    %v782 = vlaneseq
    %v783 = vshrl.u32 %v782, 7
    %v784 = vsub.s32 4, %v783
    %v785 = vrot.slane %v719, %v784
    %v786 = vlaneseq
    %v787 = vshrl.u32 %v786, 7
    %v788 = vsub.s32 0, %v787
    %v789 = vrot.slane %v720, %v788
    %v790 = vlaneseq
    %v791 = vshrl.u32 %v790, 7
    %v792 = vsub.s32 4, %v791
    %v793 = vrot.slane %v720, %v792
    %v794 = vlaneseq
    %v795 = vshrl.u32 %v794, 7
    %v796 = vsub.s32 0, %v795
    %v797 = vrot.slane %v721, %v796
    %v798 = vlaneseq
    %v799 = vshrl.u32 %v798, 7
    %v800 = vsub.s32 4, %v799
    %v801 = vrot.slane %v721, %v800
    %v802 = vlaneseq
    %v803 = vshrl.u32 %v802, 7
    %v804 = vsub.s32 0, %v803
    %v805 = vrot.slane %v722, %v804
    %v806 = vlaneseq
    %v807 = vshrl.u32 %v806, 7
    %v808 = vsub.s32 4, %v807
    %v809 = vrot.slane %v722, %v808
    %v810 = vlaneseq
    %v811 = vshrl.u32 %v810, 7
    %v812 = vsub.s32 0, %v811
    %v813 = vrot.slane %v723, %v812
    %v814 = vlaneseq
    %v815 = vshrl.u32 %v814, 7
    %v816 = vsub.s32 4, %v815
    %v817 = vrot.slane %v723, %v816
    %v818 = vlaneseq
    %v819 = vshrl.u32 %v818, 7
    %v820 = vsub.s32 0, %v819
    %v821 = vrot.slane %v724, %v820
    %v822 = vlaneseq
    %v823 = vshrl.u32 %v822, 7
    %v824 = vsub.s32 4, %v823
    %v825 = vrot.slane %v724, %v824
    %v826 = vlaneseq
    %v827 = vshrl.u32 %v826, 7
    %v828 = vsub.s32 0, %v827
    %v829 = vrot.slane %v725, %v828
    %v830 = vlaneseq
    %v831 = vshrl.u32 %v830, 7
    %v832 = vsub.s32 4, %v831
    %v833 = vrot.slane %v725, %v832
    %v834 = vlaneseq
    %v835 = vshrl.u32 %v834, 7
    %v836 = vsub.s32 0, %v835
    %v837 = vrot.slane %v726, %v836
    %v838 = vlaneseq
    %v839 = vshrl.u32 %v838, 7
    %v840 = vsub.s32 4, %v839
    %v841 = vrot.slane %v726, %v840
    %v842 = vlaneseq
    %v843 = vshrl.u32 %v842, 7
    %v844 = vsub.s32 0, %v843
    %v845 = vrot.slane %v727, %v844
    %v846 = vlaneseq
    %v847 = vshrl.u32 %v846, 7
    %v848 = vsub.s32 4, %v847
    %v849 = vrot.slane %v727, %v848
    %v850 = vlaneseq
    %v851 = vshrl.u32 %v850, 7
    %v852 = vsub.s32 0, %v851
    %v853 = vrot.slane %v728, %v852
    %v854 = vlaneseq
    %v855 = vshrl.u32 %v854, 7
    %v856 = vsub.s32 4, %v855
    %v857 = vrot.slane %v728, %v856
    %v858 = vlaneseq
    %v859 = vshrl.u32 %v858, 7
    %v860 = vsub.s32 0, %v859
    %v861 = vrot.slane %v729, %v860
    %v862 = vlaneseq
    %v863 = vshrl.u32 %v862, 7
    %v864 = vsub.s32 4, %v863
    %v865 = vrot.slane %v729, %v864
    %v866 = vlaneseq
    %v867 = vshrl.u32 %v866, 7
    %v868 = vsub.s32 0, %v867
    %v869 = vrot.slane %v730, %v868
    %v870 = vlaneseq
    %v871 = vshrl.u32 %v870, 7
    %v872 = vsub.s32 4, %v871
    %v873 = vrot.slane %v730, %v872
    %v874 = vlaneseq
    %v875 = vshrl.u32 %v874, 7
    %v876 = vsub.s32 0, %v875
    %v877 = vrot.slane %v731, %v876
    %v878 = vlaneseq
    %v879 = vshrl.u32 %v878, 7
    %v880 = vsub.s32 4, %v879
    %v881 = vrot.slane %v731, %v880
    %v914 = vlaneseq
    %v915 = vshrl.u32 %v914, 7
    %v916 = vsub.s32 0, %v915
    %v917 = vrot.slane %v757, %v916
    %v918 = vlaneseq
    %v919 = vshrl.u32 %v918, 7
    %v920 = vsub.s32 0, %v919
    %v921 = vrot.slane %v761, %v920
    %v922 = vlaneseq
    %v923 = vshrl.u32 %v922, 7
    %v924 = vsub.s32 0, %v923
    %v925 = vrot.slane %v765, %v924
    %v926 = vlaneseq
    %v927 = vshrl.u32 %v926, 7
    %v928 = vsub.s32 0, %v927
    %v929 = vrot.slane %v769, %v928
    %v930 = vlaneseq
    %v931 = vshrl.u32 %v930, 7
    %v932 = vsub.s32 0, %v931
    %v933 = vrot.slane %v773, %v932
    %v934 = vlaneseq
    %v935 = vshrl.u32 %v934, 7
    %v936 = vsub.s32 0, %v935
    %v937 = vrot.slane %v777, %v936
    %v938 = vlaneseq
    %v939 = vshrl.u32 %v938, 7
    %v940 = vsub.s32 0, %v939
    %v941 = vrot.slane %v781, %v940
    %v942 = vlaneseq
    %v943 = vshrl.u32 %v942, 7
    %v944 = vsub.s32 0, %v943
    %v945 = vrot.slane %v785, %v944
    %v946 = vlaneseq
    %v947 = vshrl.u32 %v946, 7
    %v948 = vsub.s32 0, %v947
    %v949 = vrot.slane %v789, %v948
    %v950 = vlaneseq
    %v951 = vshrl.u32 %v950, 7
    %v952 = vsub.s32 0, %v951
    %v953 = vrot.slane %v793, %v952
    %v954 = vlaneseq
    %v955 = vshrl.u32 %v954, 7
    %v956 = vsub.s32 0, %v955
    %v957 = vrot.slane %v797, %v956
    %v958 = vlaneseq
    %v959 = vshrl.u32 %v958, 7
    %v960 = vsub.s32 0, %v959
    %v961 = vrot.slane %v801, %v960
    %v962 = vlaneseq
    %v963 = vshrl.u32 %v962, 7
    %v964 = vsub.s32 0, %v963
    %v965 = vrot.slane %v805, %v964
    %v966 = vlaneseq
    %v967 = vshrl.u32 %v966, 7
    %v968 = vsub.s32 0, %v967
    %v969 = vrot.slane %v809, %v968
    %v970 = vlaneseq
    %v971 = vshrl.u32 %v970, 7
    %v972 = vsub.s32 0, %v971
    %v973 = vrot.slane %v813, %v972
    %v974 = vlaneseq
    %v975 = vshrl.u32 %v974, 7
    %v976 = vsub.s32 0, %v975
    %v977 = vrot.slane %v817, %v976
    %v978 = vlaneseq
    %v979 = vshrl.u32 %v978, 7
    %v980 = vsub.s32 0, %v979
    %v981 = vrot.slane %v821, %v980
    %v982 = vlaneseq
    %v983 = vshrl.u32 %v982, 7
    %v984 = vsub.s32 0, %v983
    %v985 = vrot.slane %v825, %v984
    %v986 = vlaneseq
    %v987 = vshrl.u32 %v986, 7
    %v988 = vsub.s32 0, %v987
    %v989 = vrot.slane %v829, %v988
    %v990 = vlaneseq
    %v991 = vshrl.u32 %v990, 7
    %v992 = vsub.s32 0, %v991
    %v993 = vrot.slane %v833, %v992
    %v994 = vlaneseq
    %v995 = vshrl.u32 %v994, 7
    %v996 = vsub.s32 0, %v995
    %v997 = vrot.slane %v837, %v996
    %v998 = vlaneseq
    %v999 = vshrl.u32 %v998, 7
    %v1000 = vsub.s32 0, %v999
    %v1001 = vrot.slane %v841, %v1000
    %v1002 = vlaneseq
    %v1003 = vshrl.u32 %v1002, 7
    %v1004 = vsub.s32 0, %v1003
    %v1005 = vrot.slane %v845, %v1004
    %v1006 = vlaneseq
    %v1007 = vshrl.u32 %v1006, 7
    %v1008 = vsub.s32 0, %v1007
    %v1009 = vrot.slane %v849, %v1008
    %v1010 = vlaneseq
    %v1011 = vshrl.u32 %v1010, 7
    %v1012 = vsub.s32 0, %v1011
    %v1013 = vrot.slane %v853, %v1012
    %v1014 = vlaneseq
    %v1015 = vshrl.u32 %v1014, 7
    %v1016 = vsub.s32 0, %v1015
    %v1017 = vrot.slane %v857, %v1016
    %v1018 = vlaneseq
    %v1019 = vshrl.u32 %v1018, 7
    %v1020 = vsub.s32 0, %v1019
    %v1021 = vrot.slane %v861, %v1020
    %v1022 = vlaneseq
    %v1023 = vshrl.u32 %v1022, 7
    %v1024 = vsub.s32 0, %v1023
    %v1025 = vrot.slane %v865, %v1024
    %v1026 = vlaneseq
    %v1027 = vshrl.u32 %v1026, 7
    %v1028 = vsub.s32 0, %v1027
    %v1029 = vrot.slane %v869, %v1028
    %v1030 = vlaneseq
    %v1031 = vshrl.u32 %v1030, 7
    %v1032 = vsub.s32 0, %v1031
    %v1033 = vrot.slane %v873, %v1032
    %v1034 = vlaneseq
    %v1035 = vshrl.u32 %v1034, 7
    %v1036 = vsub.s32 0, %v1035
    %v1037 = vrot.slane %v877, %v1036
    %v1038 = vlaneseq
    %v1039 = vshrl.u32 %v1038, 7
    %v1040 = vsub.s32 0, %v1039
    %v1041 = vrot.slane %v881, %v1040
    %1043 = vset.pattern.permute.xlu0 0
    %1044 = vperm.xlu0 %1043, %v732
    %v1045 = vpop.permute.xlu0 %1044
    %1048 = vset.pattern.permute.xlu0 0
    %1049 = vperm.xlu0 %1048, %v733
    %v1050 = vpop.permute.xlu0 %1049
    %v1052 = vmul.f32 %v917, %v1045
    %v1053 = vmul.f32 %v921, %v1045
    %v1054 = vmul.f32 %v917, %v1050
    %v1055 = vmul.f32 %v921, %v1050
    %v1056 = vmul.f32 %v925, %v1045
    %v1057 = vmul.f32 %v929, %v1045
    %v1058 = vmul.f32 %v925, %v1050
    %v1059 = vmul.f32 %v929, %v1050
    %v1060 = vmul.f32 %v933, %v1045
    %v1061 = vmul.f32 %v937, %v1045
    %v1062 = vmul.f32 %v933, %v1050
    %v1063 = vmul.f32 %v937, %v1050
    %v1064 = vmul.f32 %v941, %v1045
    %v1065 = vmul.f32 %v945, %v1045
    %v1066 = vmul.f32 %v941, %v1050
    %v1067 = vmul.f32 %v945, %v1050
    %v1068 = vmul.f32 %v949, %v1045
    %v1069 = vmul.f32 %v953, %v1045
    %v1070 = vmul.f32 %v949, %v1050
    %v1071 = vmul.f32 %v953, %v1050
    %v1072 = vmul.f32 %v957, %v1045
    %v1073 = vmul.f32 %v961, %v1045
    %v1074 = vmul.f32 %v957, %v1050
    %v1075 = vmul.f32 %v961, %v1050
    %v1076 = vmul.f32 %v965, %v1045
    %v1077 = vmul.f32 %v969, %v1045
    %v1078 = vmul.f32 %v965, %v1050
    %v1079 = vmul.f32 %v969, %v1050
    %v1080 = vmul.f32 %v973, %v1045
    %v1081 = vmul.f32 %v977, %v1045
    %v1082 = vmul.f32 %v973, %v1050
    %v1083 = vmul.f32 %v977, %v1050
    %v1084 = vmul.f32 %v981, %v1045
    %v1085 = vmul.f32 %v985, %v1045
    %v1086 = vmul.f32 %v981, %v1050
    %v1087 = vmul.f32 %v985, %v1050
    %v1088 = vmul.f32 %v989, %v1045
    %v1089 = vmul.f32 %v993, %v1045
    %v1090 = vmul.f32 %v989, %v1050
    %v1091 = vmul.f32 %v993, %v1050
    %v1092 = vmul.f32 %v997, %v1045
    %v1093 = vmul.f32 %v1001, %v1045
    %v1094 = vmul.f32 %v997, %v1050
    %v1095 = vmul.f32 %v1001, %v1050
    %v1096 = vmul.f32 %v1005, %v1045
    %v1097 = vmul.f32 %v1009, %v1045
    %v1098 = vmul.f32 %v1005, %v1050
    %v1099 = vmul.f32 %v1009, %v1050
    %v1100 = vmul.f32 %v1013, %v1045
    %v1101 = vmul.f32 %v1017, %v1045
    %v1102 = vmul.f32 %v1013, %v1050
    %v1103 = vmul.f32 %v1017, %v1050
    %v1104 = vmul.f32 %v1021, %v1045
    %v1105 = vmul.f32 %v1025, %v1045
    %v1106 = vmul.f32 %v1021, %v1050
    %v1107 = vmul.f32 %v1025, %v1050
    %v1108 = vmul.f32 %v1029, %v1045
    %v1109 = vmul.f32 %v1033, %v1045
    %v1110 = vmul.f32 %v1029, %v1050
    %v1111 = vmul.f32 %v1033, %v1050
    %v1112 = vmul.f32 %v1037, %v1045
    %v1113 = vmul.f32 %v1041, %v1045
    %v1114 = vmul.f32 %v1037, %v1050
    %v1115 = vmul.f32 %v1041, %v1050
    %v1116 = vlaneseq
    %v1117 = vshrl.u32 %v1116, 7
    %v1118 = vsub.s32 1, %v1117
    %v1119 = vrot.slane %v716, %v1118
    %v1120 = vlaneseq
    %v1121 = vshrl.u32 %v1120, 7
    %v1122 = vsub.s32 5, %v1121
    %v1123 = vrot.slane %v716, %v1122
    %v1124 = vlaneseq
    %v1125 = vshrl.u32 %v1124, 7
    %v1126 = vsub.s32 1, %v1125
    %v1127 = vrot.slane %v717, %v1126
    %v1128 = vlaneseq
    %v1129 = vshrl.u32 %v1128, 7
    %v1130 = vsub.s32 5, %v1129
    %v1131 = vrot.slane %v717, %v1130
    %v1132 = vlaneseq
    %v1133 = vshrl.u32 %v1132, 7
    %v1134 = vsub.s32 1, %v1133
    %v1135 = vrot.slane %v718, %v1134
    %v1136 = vlaneseq
    %v1137 = vshrl.u32 %v1136, 7
    %v1138 = vsub.s32 5, %v1137
    %v1139 = vrot.slane %v718, %v1138
    %v1140 = vlaneseq
    %v1141 = vshrl.u32 %v1140, 7
    %v1142 = vsub.s32 1, %v1141
    %v1143 = vrot.slane %v719, %v1142
    %v1144 = vlaneseq
    %v1145 = vshrl.u32 %v1144, 7
    %v1146 = vsub.s32 5, %v1145
    %v1147 = vrot.slane %v719, %v1146
    %v1148 = vlaneseq
    %v1149 = vshrl.u32 %v1148, 7
    %v1150 = vsub.s32 1, %v1149
    %v1151 = vrot.slane %v720, %v1150
    %v1152 = vlaneseq
    %v1153 = vshrl.u32 %v1152, 7
    %v1154 = vsub.s32 5, %v1153
    %v1155 = vrot.slane %v720, %v1154
    %v1156 = vlaneseq
    %v1157 = vshrl.u32 %v1156, 7
    %v1158 = vsub.s32 1, %v1157
    %v1159 = vrot.slane %v721, %v1158
    %v1160 = vlaneseq
    %v1161 = vshrl.u32 %v1160, 7
    %v1162 = vsub.s32 5, %v1161
    %v1163 = vrot.slane %v721, %v1162
    %v1164 = vlaneseq
    %v1165 = vshrl.u32 %v1164, 7
    %v1166 = vsub.s32 1, %v1165
    %v1167 = vrot.slane %v722, %v1166
    %v1168 = vlaneseq
    %v1169 = vshrl.u32 %v1168, 7
    %v1170 = vsub.s32 5, %v1169
    %v1171 = vrot.slane %v722, %v1170
    %v1172 = vlaneseq
    %v1173 = vshrl.u32 %v1172, 7
    %v1174 = vsub.s32 1, %v1173
    %v1175 = vrot.slane %v723, %v1174
    %v1176 = vlaneseq
    %v1177 = vshrl.u32 %v1176, 7
    %v1178 = vsub.s32 5, %v1177
    %v1179 = vrot.slane %v723, %v1178
    %v1180 = vlaneseq
    %v1181 = vshrl.u32 %v1180, 7
    %v1182 = vsub.s32 1, %v1181
    %v1183 = vrot.slane %v724, %v1182
    %v1184 = vlaneseq
    %v1185 = vshrl.u32 %v1184, 7
    %v1186 = vsub.s32 5, %v1185
    %v1187 = vrot.slane %v724, %v1186
    %v1188 = vlaneseq
    %v1189 = vshrl.u32 %v1188, 7
    %v1190 = vsub.s32 1, %v1189
    %v1191 = vrot.slane %v725, %v1190
    %v1192 = vlaneseq
    %v1193 = vshrl.u32 %v1192, 7
    %v1194 = vsub.s32 5, %v1193
    %v1195 = vrot.slane %v725, %v1194
    %v1196 = vlaneseq
    %v1197 = vshrl.u32 %v1196, 7
    %v1198 = vsub.s32 1, %v1197
    %v1199 = vrot.slane %v726, %v1198
    %v1200 = vlaneseq
    %v1201 = vshrl.u32 %v1200, 7
    %v1202 = vsub.s32 5, %v1201
    %v1203 = vrot.slane %v726, %v1202
    %v1204 = vlaneseq
    %v1205 = vshrl.u32 %v1204, 7
    %v1206 = vsub.s32 1, %v1205
    %v1207 = vrot.slane %v727, %v1206
    %v1208 = vlaneseq
    %v1209 = vshrl.u32 %v1208, 7
    %v1210 = vsub.s32 5, %v1209
    %v1211 = vrot.slane %v727, %v1210
    %v1212 = vlaneseq
    %v1213 = vshrl.u32 %v1212, 7
    %v1214 = vsub.s32 1, %v1213
    %v1215 = vrot.slane %v728, %v1214
    %v1216 = vlaneseq
    %v1217 = vshrl.u32 %v1216, 7
    %v1218 = vsub.s32 5, %v1217
    %v1219 = vrot.slane %v728, %v1218
    %v1220 = vlaneseq
    %v1221 = vshrl.u32 %v1220, 7
    %v1222 = vsub.s32 1, %v1221
    %v1223 = vrot.slane %v729, %v1222
    %v1224 = vlaneseq
    %v1225 = vshrl.u32 %v1224, 7
    %v1226 = vsub.s32 5, %v1225
    %v1227 = vrot.slane %v729, %v1226
    %v1228 = vlaneseq
    %v1229 = vshrl.u32 %v1228, 7
    %v1230 = vsub.s32 1, %v1229
    %v1231 = vrot.slane %v730, %v1230
    %v1232 = vlaneseq
    %v1233 = vshrl.u32 %v1232, 7
    %v1234 = vsub.s32 5, %v1233
    %v1235 = vrot.slane %v730, %v1234
    %v1236 = vlaneseq
    %v1237 = vshrl.u32 %v1236, 7
    %v1238 = vsub.s32 1, %v1237
    %v1239 = vrot.slane %v731, %v1238
    %v1240 = vlaneseq
    %v1241 = vshrl.u32 %v1240, 7
    %v1242 = vsub.s32 5, %v1241
    %v1243 = vrot.slane %v731, %v1242
    %v1276 = vlaneseq
    %v1277 = vshrl.u32 %v1276, 7
    %v1278 = vsub.s32 1, %v1277
    %v1279 = vrot.slane %v1119, %v1278
    %v1280 = vlaneseq
    %v1281 = vshrl.u32 %v1280, 7
    %v1282 = vsub.s32 1, %v1281
    %v1283 = vrot.slane %v1123, %v1282
    %v1284 = vlaneseq
    %v1285 = vshrl.u32 %v1284, 7
    %v1286 = vsub.s32 1, %v1285
    %v1287 = vrot.slane %v1127, %v1286
    %v1288 = vlaneseq
    %v1289 = vshrl.u32 %v1288, 7
    %v1290 = vsub.s32 1, %v1289
    %v1291 = vrot.slane %v1131, %v1290
    %v1292 = vlaneseq
    %v1293 = vshrl.u32 %v1292, 7
    %v1294 = vsub.s32 1, %v1293
    %v1295 = vrot.slane %v1135, %v1294
    %v1296 = vlaneseq
    %v1297 = vshrl.u32 %v1296, 7
    %v1298 = vsub.s32 1, %v1297
    %v1299 = vrot.slane %v1139, %v1298
    %v1300 = vlaneseq
    %v1301 = vshrl.u32 %v1300, 7
    %v1302 = vsub.s32 1, %v1301
    %v1303 = vrot.slane %v1143, %v1302
    %v1304 = vlaneseq
    %v1305 = vshrl.u32 %v1304, 7
    %v1306 = vsub.s32 1, %v1305
    %v1307 = vrot.slane %v1147, %v1306
    %v1308 = vlaneseq
    %v1309 = vshrl.u32 %v1308, 7
    %v1310 = vsub.s32 1, %v1309
    %v1311 = vrot.slane %v1151, %v1310
    %v1312 = vlaneseq
    %v1313 = vshrl.u32 %v1312, 7
    %v1314 = vsub.s32 1, %v1313
    %v1315 = vrot.slane %v1155, %v1314
    %v1316 = vlaneseq
    %v1317 = vshrl.u32 %v1316, 7
    %v1318 = vsub.s32 1, %v1317
    %v1319 = vrot.slane %v1159, %v1318
    %v1320 = vlaneseq
    %v1321 = vshrl.u32 %v1320, 7
    %v1322 = vsub.s32 1, %v1321
    %v1323 = vrot.slane %v1163, %v1322
    %v1324 = vlaneseq
    %v1325 = vshrl.u32 %v1324, 7
    %v1326 = vsub.s32 1, %v1325
    %v1327 = vrot.slane %v1167, %v1326
    %v1328 = vlaneseq
    %v1329 = vshrl.u32 %v1328, 7
    %v1330 = vsub.s32 1, %v1329
    %v1331 = vrot.slane %v1171, %v1330
    %v1332 = vlaneseq
    %v1333 = vshrl.u32 %v1332, 7
    %v1334 = vsub.s32 1, %v1333
    %v1335 = vrot.slane %v1175, %v1334
    %v1336 = vlaneseq
    %v1337 = vshrl.u32 %v1336, 7
    %v1338 = vsub.s32 1, %v1337
    %v1339 = vrot.slane %v1179, %v1338
    %v1340 = vlaneseq
    %v1341 = vshrl.u32 %v1340, 7
    %v1342 = vsub.s32 1, %v1341
    %v1343 = vrot.slane %v1183, %v1342
    %v1344 = vlaneseq
    %v1345 = vshrl.u32 %v1344, 7
    %v1346 = vsub.s32 1, %v1345
    %v1347 = vrot.slane %v1187, %v1346
    %v1348 = vlaneseq
    %v1349 = vshrl.u32 %v1348, 7
    %v1350 = vsub.s32 1, %v1349
    %v1351 = vrot.slane %v1191, %v1350
    %v1352 = vlaneseq
    %v1353 = vshrl.u32 %v1352, 7
    %v1354 = vsub.s32 1, %v1353
    %v1355 = vrot.slane %v1195, %v1354
    %v1356 = vlaneseq
    %v1357 = vshrl.u32 %v1356, 7
    %v1358 = vsub.s32 1, %v1357
    %v1359 = vrot.slane %v1199, %v1358
    %v1360 = vlaneseq
    %v1361 = vshrl.u32 %v1360, 7
    %v1362 = vsub.s32 1, %v1361
    %v1363 = vrot.slane %v1203, %v1362
    %v1364 = vlaneseq
    %v1365 = vshrl.u32 %v1364, 7
    %v1366 = vsub.s32 1, %v1365
    %v1367 = vrot.slane %v1207, %v1366
    %v1368 = vlaneseq
    %v1369 = vshrl.u32 %v1368, 7
    %v1370 = vsub.s32 1, %v1369
    %v1371 = vrot.slane %v1211, %v1370
    %v1372 = vlaneseq
    %v1373 = vshrl.u32 %v1372, 7
    %v1374 = vsub.s32 1, %v1373
    %v1375 = vrot.slane %v1215, %v1374
    %v1376 = vlaneseq
    %v1377 = vshrl.u32 %v1376, 7
    %v1378 = vsub.s32 1, %v1377
    %v1379 = vrot.slane %v1219, %v1378
    %v1380 = vlaneseq
    %v1381 = vshrl.u32 %v1380, 7
    %v1382 = vsub.s32 1, %v1381
    %v1383 = vrot.slane %v1223, %v1382
    %v1384 = vlaneseq
    %v1385 = vshrl.u32 %v1384, 7
    %v1386 = vsub.s32 1, %v1385
    %v1387 = vrot.slane %v1227, %v1386
    %v1388 = vlaneseq
    %v1389 = vshrl.u32 %v1388, 7
    %v1390 = vsub.s32 1, %v1389
    %v1391 = vrot.slane %v1231, %v1390
    %v1392 = vlaneseq
    %v1393 = vshrl.u32 %v1392, 7
    %v1394 = vsub.s32 1, %v1393
    %v1395 = vrot.slane %v1235, %v1394
    %v1396 = vlaneseq
    %v1397 = vshrl.u32 %v1396, 7
    %v1398 = vsub.s32 1, %v1397
    %v1399 = vrot.slane %v1239, %v1398
    %v1400 = vlaneseq
    %v1401 = vshrl.u32 %v1400, 7
    %v1402 = vsub.s32 1, %v1401
    %v1403 = vrot.slane %v1243, %v1402
    %1405 = vset.pattern.permute.xlu0 0
    %1406 = vperm.xlu0 %1405, %v734
    %v1407 = vpop.permute.xlu0 %1406
    %1410 = vset.pattern.permute.xlu0 0
    %1411 = vperm.xlu0 %1410, %v735
    %v1412 = vpop.permute.xlu0 %1411
    %v1414 = vmul.f32 %v1279, %v1407
    %v1415 = vmul.f32 %v1283, %v1407
    %v1416 = vmul.f32 %v1279, %v1412
    %v1417 = vmul.f32 %v1283, %v1412
    %v1418 = vmul.f32 %v1287, %v1407
    %v1419 = vmul.f32 %v1291, %v1407
    %v1420 = vmul.f32 %v1287, %v1412
    %v1421 = vmul.f32 %v1291, %v1412
    %v1422 = vmul.f32 %v1295, %v1407
    %v1423 = vmul.f32 %v1299, %v1407
    %v1424 = vmul.f32 %v1295, %v1412
    %v1425 = vmul.f32 %v1299, %v1412
    %v1426 = vmul.f32 %v1303, %v1407
    %v1427 = vmul.f32 %v1307, %v1407
    %v1428 = vmul.f32 %v1303, %v1412
    %v1429 = vmul.f32 %v1307, %v1412
    %v1430 = vmul.f32 %v1311, %v1407
    %v1431 = vmul.f32 %v1315, %v1407
    %v1432 = vmul.f32 %v1311, %v1412
    %v1433 = vmul.f32 %v1315, %v1412
    %v1434 = vmul.f32 %v1319, %v1407
    %v1435 = vmul.f32 %v1323, %v1407
    %v1436 = vmul.f32 %v1319, %v1412
    %v1437 = vmul.f32 %v1323, %v1412
    %v1438 = vmul.f32 %v1327, %v1407
    %v1439 = vmul.f32 %v1331, %v1407
    %v1440 = vmul.f32 %v1327, %v1412
    %v1441 = vmul.f32 %v1331, %v1412
    %v1442 = vmul.f32 %v1335, %v1407
    %v1443 = vmul.f32 %v1339, %v1407
    %v1444 = vmul.f32 %v1335, %v1412
    %v1445 = vmul.f32 %v1339, %v1412
    %v1446 = vmul.f32 %v1343, %v1407
    %v1447 = vmul.f32 %v1347, %v1407
    %v1448 = vmul.f32 %v1343, %v1412
    %v1449 = vmul.f32 %v1347, %v1412
    %v1450 = vmul.f32 %v1351, %v1407
    %v1451 = vmul.f32 %v1355, %v1407
    %v1452 = vmul.f32 %v1351, %v1412
    %v1453 = vmul.f32 %v1355, %v1412
    %v1454 = vmul.f32 %v1359, %v1407
    %v1455 = vmul.f32 %v1363, %v1407
    %v1456 = vmul.f32 %v1359, %v1412
    %v1457 = vmul.f32 %v1363, %v1412
    %v1458 = vmul.f32 %v1367, %v1407
    %v1459 = vmul.f32 %v1371, %v1407
    %v1460 = vmul.f32 %v1367, %v1412
    %v1461 = vmul.f32 %v1371, %v1412
    %v1462 = vmul.f32 %v1375, %v1407
    %v1463 = vmul.f32 %v1379, %v1407
    %v1464 = vmul.f32 %v1375, %v1412
    %v1465 = vmul.f32 %v1379, %v1412
    %v1466 = vmul.f32 %v1383, %v1407
    %v1467 = vmul.f32 %v1387, %v1407
    %v1468 = vmul.f32 %v1383, %v1412
    %v1469 = vmul.f32 %v1387, %v1412
    %v1470 = vmul.f32 %v1391, %v1407
    %v1471 = vmul.f32 %v1395, %v1407
    %v1472 = vmul.f32 %v1391, %v1412
    %v1473 = vmul.f32 %v1395, %v1412
    %v1474 = vmul.f32 %v1399, %v1407
    %v1475 = vmul.f32 %v1403, %v1407
    %v1476 = vmul.f32 %v1399, %v1412
    %v1477 = vmul.f32 %v1403, %v1412
    %v1478 = vadd.f32 %v1052, %v1414
    %v1479 = vadd.f32 %v1053, %v1415
    %v1480 = vadd.f32 %v1054, %v1416
    %v1481 = vadd.f32 %v1055, %v1417
    %v1482 = vadd.f32 %v1056, %v1418
    %v1483 = vadd.f32 %v1057, %v1419
    %v1484 = vadd.f32 %v1058, %v1420
    %v1485 = vadd.f32 %v1059, %v1421
    %v1486 = vadd.f32 %v1060, %v1422
    %v1487 = vadd.f32 %v1061, %v1423
    %v1488 = vadd.f32 %v1062, %v1424
    %v1489 = vadd.f32 %v1063, %v1425
    %v1490 = vadd.f32 %v1064, %v1426
    %v1491 = vadd.f32 %v1065, %v1427
    %v1492 = vadd.f32 %v1066, %v1428
    %v1493 = vadd.f32 %v1067, %v1429
    %v1494 = vadd.f32 %v1068, %v1430
    %v1495 = vadd.f32 %v1069, %v1431
    %v1496 = vadd.f32 %v1070, %v1432
    %v1497 = vadd.f32 %v1071, %v1433
    %v1498 = vadd.f32 %v1072, %v1434
    %v1499 = vadd.f32 %v1073, %v1435
    %v1500 = vadd.f32 %v1074, %v1436
    %v1501 = vadd.f32 %v1075, %v1437
    %v1502 = vadd.f32 %v1076, %v1438
    %v1503 = vadd.f32 %v1077, %v1439
    %v1504 = vadd.f32 %v1078, %v1440
    %v1505 = vadd.f32 %v1079, %v1441
    %v1506 = vadd.f32 %v1080, %v1442
    %v1507 = vadd.f32 %v1081, %v1443
    %v1508 = vadd.f32 %v1082, %v1444
    %v1509 = vadd.f32 %v1083, %v1445
    %v1510 = vadd.f32 %v1084, %v1446
    %v1511 = vadd.f32 %v1085, %v1447
    %v1512 = vadd.f32 %v1086, %v1448
    %v1513 = vadd.f32 %v1087, %v1449
    %v1514 = vadd.f32 %v1088, %v1450
    %v1515 = vadd.f32 %v1089, %v1451
    %v1516 = vadd.f32 %v1090, %v1452
    %v1517 = vadd.f32 %v1091, %v1453
    %v1518 = vadd.f32 %v1092, %v1454
    %v1519 = vadd.f32 %v1093, %v1455
    %v1520 = vadd.f32 %v1094, %v1456
    %v1521 = vadd.f32 %v1095, %v1457
    %v1522 = vadd.f32 %v1096, %v1458
    %v1523 = vadd.f32 %v1097, %v1459
    %v1524 = vadd.f32 %v1098, %v1460
    %v1525 = vadd.f32 %v1099, %v1461
    %v1526 = vadd.f32 %v1100, %v1462
    %v1527 = vadd.f32 %v1101, %v1463
    %v1528 = vadd.f32 %v1102, %v1464
    %v1529 = vadd.f32 %v1103, %v1465
    %v1530 = vadd.f32 %v1104, %v1466
    %v1531 = vadd.f32 %v1105, %v1467
    %v1532 = vadd.f32 %v1106, %v1468
    %v1533 = vadd.f32 %v1107, %v1469
    %v1534 = vadd.f32 %v1108, %v1470
    %v1535 = vadd.f32 %v1109, %v1471
    %v1536 = vadd.f32 %v1110, %v1472
    %v1537 = vadd.f32 %v1111, %v1473
    %v1538 = vadd.f32 %v1112, %v1474
    %v1539 = vadd.f32 %v1113, %v1475
    %v1540 = vadd.f32 %v1114, %v1476
    %v1541 = vadd.f32 %v1115, %v1477
    %v1542 = vlaneseq
    %v1543 = vshrl.u32 %v1542, 7
    %v1544 = vsub.s32 2, %v1543
    %v1545 = vrot.slane %v716, %v1544
    %v1546 = vlaneseq
    %v1547 = vshrl.u32 %v1546, 7
    %v1548 = vsub.s32 6, %v1547
    %v1549 = vrot.slane %v716, %v1548
    %v1550 = vlaneseq
    %v1551 = vshrl.u32 %v1550, 7
    %v1552 = vsub.s32 2, %v1551
    %v1553 = vrot.slane %v717, %v1552
    %v1554 = vlaneseq
    %v1555 = vshrl.u32 %v1554, 7
    %v1556 = vsub.s32 6, %v1555
    %v1557 = vrot.slane %v717, %v1556
    %v1558 = vlaneseq
    %v1559 = vshrl.u32 %v1558, 7
    %v1560 = vsub.s32 2, %v1559
    %v1561 = vrot.slane %v718, %v1560
    %v1562 = vlaneseq
    %v1563 = vshrl.u32 %v1562, 7
    %v1564 = vsub.s32 6, %v1563
    %v1565 = vrot.slane %v718, %v1564
    %v1566 = vlaneseq
    %v1567 = vshrl.u32 %v1566, 7
    %v1568 = vsub.s32 2, %v1567
    %v1569 = vrot.slane %v719, %v1568
    %v1570 = vlaneseq
    %v1571 = vshrl.u32 %v1570, 7
    %v1572 = vsub.s32 6, %v1571
    %v1573 = vrot.slane %v719, %v1572
    %v1574 = vlaneseq
    %v1575 = vshrl.u32 %v1574, 7
    %v1576 = vsub.s32 2, %v1575
    %v1577 = vrot.slane %v720, %v1576
    %v1578 = vlaneseq
    %v1579 = vshrl.u32 %v1578, 7
    %v1580 = vsub.s32 6, %v1579
    %v1581 = vrot.slane %v720, %v1580
    %v1582 = vlaneseq
    %v1583 = vshrl.u32 %v1582, 7
    %v1584 = vsub.s32 2, %v1583
    %v1585 = vrot.slane %v721, %v1584
    %v1586 = vlaneseq
    %v1587 = vshrl.u32 %v1586, 7
    %v1588 = vsub.s32 6, %v1587
    %v1589 = vrot.slane %v721, %v1588
    %v1590 = vlaneseq
    %v1591 = vshrl.u32 %v1590, 7
    %v1592 = vsub.s32 2, %v1591
    %v1593 = vrot.slane %v722, %v1592
    %v1594 = vlaneseq
    %v1595 = vshrl.u32 %v1594, 7
    %v1596 = vsub.s32 6, %v1595
    %v1597 = vrot.slane %v722, %v1596
    %v1598 = vlaneseq
    %v1599 = vshrl.u32 %v1598, 7
    %v1600 = vsub.s32 2, %v1599
    %v1601 = vrot.slane %v723, %v1600
    %v1602 = vlaneseq
    %v1603 = vshrl.u32 %v1602, 7
    %v1604 = vsub.s32 6, %v1603
    %v1605 = vrot.slane %v723, %v1604
    %v1606 = vlaneseq
    %v1607 = vshrl.u32 %v1606, 7
    %v1608 = vsub.s32 2, %v1607
    %v1609 = vrot.slane %v724, %v1608
    %v1610 = vlaneseq
    %v1611 = vshrl.u32 %v1610, 7
    %v1612 = vsub.s32 6, %v1611
    %v1613 = vrot.slane %v724, %v1612
    %v1614 = vlaneseq
    %v1615 = vshrl.u32 %v1614, 7
    %v1616 = vsub.s32 2, %v1615
    %v1617 = vrot.slane %v725, %v1616
    %v1618 = vlaneseq
    %v1619 = vshrl.u32 %v1618, 7
    %v1620 = vsub.s32 6, %v1619
    %v1621 = vrot.slane %v725, %v1620
    %v1622 = vlaneseq
    %v1623 = vshrl.u32 %v1622, 7
    %v1624 = vsub.s32 2, %v1623
    %v1625 = vrot.slane %v726, %v1624
    %v1626 = vlaneseq
    %v1627 = vshrl.u32 %v1626, 7
    %v1628 = vsub.s32 6, %v1627
    %v1629 = vrot.slane %v726, %v1628
    %v1630 = vlaneseq
    %v1631 = vshrl.u32 %v1630, 7
    %v1632 = vsub.s32 2, %v1631
    %v1633 = vrot.slane %v727, %v1632
    %v1634 = vlaneseq
    %v1635 = vshrl.u32 %v1634, 7
    %v1636 = vsub.s32 6, %v1635
    %v1637 = vrot.slane %v727, %v1636
    %v1638 = vlaneseq
    %v1639 = vshrl.u32 %v1638, 7
    %v1640 = vsub.s32 2, %v1639
    %v1641 = vrot.slane %v728, %v1640
    %v1642 = vlaneseq
    %v1643 = vshrl.u32 %v1642, 7
    %v1644 = vsub.s32 6, %v1643
    %v1645 = vrot.slane %v728, %v1644
    %v1646 = vlaneseq
    %v1647 = vshrl.u32 %v1646, 7
    %v1648 = vsub.s32 2, %v1647
    %v1649 = vrot.slane %v729, %v1648
    %v1650 = vlaneseq
    %v1651 = vshrl.u32 %v1650, 7
    %v1652 = vsub.s32 6, %v1651
    %v1653 = vrot.slane %v729, %v1652
    %v1654 = vlaneseq
    %v1655 = vshrl.u32 %v1654, 7
    %v1656 = vsub.s32 2, %v1655
    %v1657 = vrot.slane %v730, %v1656
    %v1658 = vlaneseq
    %v1659 = vshrl.u32 %v1658, 7
    %v1660 = vsub.s32 6, %v1659
    %v1661 = vrot.slane %v730, %v1660
    %v1662 = vlaneseq
    %v1663 = vshrl.u32 %v1662, 7
    %v1664 = vsub.s32 2, %v1663
    %v1665 = vrot.slane %v731, %v1664
    %v1666 = vlaneseq
    %v1667 = vshrl.u32 %v1666, 7
    %v1668 = vsub.s32 6, %v1667
    %v1669 = vrot.slane %v731, %v1668
    %v1702 = vlaneseq
    %v1703 = vshrl.u32 %v1702, 7
    %v1704 = vsub.s32 2, %v1703
    %v1705 = vrot.slane %v1545, %v1704
    %v1706 = vlaneseq
    %v1707 = vshrl.u32 %v1706, 7
    %v1708 = vsub.s32 2, %v1707
    %v1709 = vrot.slane %v1549, %v1708
    %v1710 = vlaneseq
    %v1711 = vshrl.u32 %v1710, 7
    %v1712 = vsub.s32 2, %v1711
    %v1713 = vrot.slane %v1553, %v1712
    %v1714 = vlaneseq
    %v1715 = vshrl.u32 %v1714, 7
    %v1716 = vsub.s32 2, %v1715
    %v1717 = vrot.slane %v1557, %v1716
    %v1718 = vlaneseq
    %v1719 = vshrl.u32 %v1718, 7
    %v1720 = vsub.s32 2, %v1719
    %v1721 = vrot.slane %v1561, %v1720
    %v1722 = vlaneseq
    %v1723 = vshrl.u32 %v1722, 7
    %v1724 = vsub.s32 2, %v1723
    %v1725 = vrot.slane %v1565, %v1724
    %v1726 = vlaneseq
    %v1727 = vshrl.u32 %v1726, 7
    %v1728 = vsub.s32 2, %v1727
    %v1729 = vrot.slane %v1569, %v1728
    %v1730 = vlaneseq
    %v1731 = vshrl.u32 %v1730, 7
    %v1732 = vsub.s32 2, %v1731
    %v1733 = vrot.slane %v1573, %v1732
    %v1734 = vlaneseq
    %v1735 = vshrl.u32 %v1734, 7
    %v1736 = vsub.s32 2, %v1735
    %v1737 = vrot.slane %v1577, %v1736
    %v1738 = vlaneseq
    %v1739 = vshrl.u32 %v1738, 7
    %v1740 = vsub.s32 2, %v1739
    %v1741 = vrot.slane %v1581, %v1740
    %v1742 = vlaneseq
    %v1743 = vshrl.u32 %v1742, 7
    %v1744 = vsub.s32 2, %v1743
    %v1745 = vrot.slane %v1585, %v1744
    %v1746 = vlaneseq
    %v1747 = vshrl.u32 %v1746, 7
    %v1748 = vsub.s32 2, %v1747
    %v1749 = vrot.slane %v1589, %v1748
    %v1750 = vlaneseq
    %v1751 = vshrl.u32 %v1750, 7
    %v1752 = vsub.s32 2, %v1751
    %v1753 = vrot.slane %v1593, %v1752
    %v1754 = vlaneseq
    %v1755 = vshrl.u32 %v1754, 7
    %v1756 = vsub.s32 2, %v1755
    %v1757 = vrot.slane %v1597, %v1756
    %v1758 = vlaneseq
    %v1759 = vshrl.u32 %v1758, 7
    %v1760 = vsub.s32 2, %v1759
    %v1761 = vrot.slane %v1601, %v1760
    %v1762 = vlaneseq
    %v1763 = vshrl.u32 %v1762, 7
    %v1764 = vsub.s32 2, %v1763
    %v1765 = vrot.slane %v1605, %v1764
    %v1766 = vlaneseq
    %v1767 = vshrl.u32 %v1766, 7
    %v1768 = vsub.s32 2, %v1767
    %v1769 = vrot.slane %v1609, %v1768
    %v1770 = vlaneseq
    %v1771 = vshrl.u32 %v1770, 7
    %v1772 = vsub.s32 2, %v1771
    %v1773 = vrot.slane %v1613, %v1772
    %v1774 = vlaneseq
    %v1775 = vshrl.u32 %v1774, 7
    %v1776 = vsub.s32 2, %v1775
    %v1777 = vrot.slane %v1617, %v1776
    %v1778 = vlaneseq
    %v1779 = vshrl.u32 %v1778, 7
    %v1780 = vsub.s32 2, %v1779
    %v1781 = vrot.slane %v1621, %v1780
    %v1782 = vlaneseq
    %v1783 = vshrl.u32 %v1782, 7
    %v1784 = vsub.s32 2, %v1783
    %v1785 = vrot.slane %v1625, %v1784
    %v1786 = vlaneseq
    %v1787 = vshrl.u32 %v1786, 7
    %v1788 = vsub.s32 2, %v1787
    %v1789 = vrot.slane %v1629, %v1788
    %v1790 = vlaneseq
    %v1791 = vshrl.u32 %v1790, 7
    %v1792 = vsub.s32 2, %v1791
    %v1793 = vrot.slane %v1633, %v1792
    %v1794 = vlaneseq
    %v1795 = vshrl.u32 %v1794, 7
    %v1796 = vsub.s32 2, %v1795
    %v1797 = vrot.slane %v1637, %v1796
    %v1798 = vlaneseq
    %v1799 = vshrl.u32 %v1798, 7
    %v1800 = vsub.s32 2, %v1799
    %v1801 = vrot.slane %v1641, %v1800
    %v1802 = vlaneseq
    %v1803 = vshrl.u32 %v1802, 7
    %v1804 = vsub.s32 2, %v1803
    %v1805 = vrot.slane %v1645, %v1804
    %v1806 = vlaneseq
    %v1807 = vshrl.u32 %v1806, 7
    %v1808 = vsub.s32 2, %v1807
    %v1809 = vrot.slane %v1649, %v1808
    %v1810 = vlaneseq
    %v1811 = vshrl.u32 %v1810, 7
    %v1812 = vsub.s32 2, %v1811
    %v1813 = vrot.slane %v1653, %v1812
    %v1814 = vlaneseq
    %v1815 = vshrl.u32 %v1814, 7
    %v1816 = vsub.s32 2, %v1815
    %v1817 = vrot.slane %v1657, %v1816
    %v1818 = vlaneseq
    %v1819 = vshrl.u32 %v1818, 7
    %v1820 = vsub.s32 2, %v1819
    %v1821 = vrot.slane %v1661, %v1820
    %v1822 = vlaneseq
    %v1823 = vshrl.u32 %v1822, 7
    %v1824 = vsub.s32 2, %v1823
    %v1825 = vrot.slane %v1665, %v1824
    %v1826 = vlaneseq
    %v1827 = vshrl.u32 %v1826, 7
    %v1828 = vsub.s32 2, %v1827
    %v1829 = vrot.slane %v1669, %v1828
    %1831 = vset.pattern.permute.xlu0 0
    %1832 = vperm.xlu0 %1831, %v736
    %v1833 = vpop.permute.xlu0 %1832
    %1836 = vset.pattern.permute.xlu0 0
    %1837 = vperm.xlu0 %1836, %v737
    %v1838 = vpop.permute.xlu0 %1837
    %v1840 = vmul.f32 %v1705, %v1833
    %v1841 = vmul.f32 %v1709, %v1833
    %v1842 = vmul.f32 %v1705, %v1838
    %v1843 = vmul.f32 %v1709, %v1838
    %v1844 = vmul.f32 %v1713, %v1833
    %v1845 = vmul.f32 %v1717, %v1833
    %v1846 = vmul.f32 %v1713, %v1838
    %v1847 = vmul.f32 %v1717, %v1838
    %v1848 = vmul.f32 %v1721, %v1833
    %v1849 = vmul.f32 %v1725, %v1833
    %v1850 = vmul.f32 %v1721, %v1838
    %v1851 = vmul.f32 %v1725, %v1838
    %v1852 = vmul.f32 %v1729, %v1833
    %v1853 = vmul.f32 %v1733, %v1833
    %v1854 = vmul.f32 %v1729, %v1838
    %v1855 = vmul.f32 %v1733, %v1838
    %v1856 = vmul.f32 %v1737, %v1833
    %v1857 = vmul.f32 %v1741, %v1833
    %v1858 = vmul.f32 %v1737, %v1838
    %v1859 = vmul.f32 %v1741, %v1838
    %v1860 = vmul.f32 %v1745, %v1833
    %v1861 = vmul.f32 %v1749, %v1833
    %v1862 = vmul.f32 %v1745, %v1838
    %v1863 = vmul.f32 %v1749, %v1838
    %v1864 = vmul.f32 %v1753, %v1833
    %v1865 = vmul.f32 %v1757, %v1833
    %v1866 = vmul.f32 %v1753, %v1838
    %v1867 = vmul.f32 %v1757, %v1838
    %v1868 = vmul.f32 %v1761, %v1833
    %v1869 = vmul.f32 %v1765, %v1833
    %v1870 = vmul.f32 %v1761, %v1838
    %v1871 = vmul.f32 %v1765, %v1838
    %v1872 = vmul.f32 %v1769, %v1833
    %v1873 = vmul.f32 %v1773, %v1833
    %v1874 = vmul.f32 %v1769, %v1838
    %v1875 = vmul.f32 %v1773, %v1838
    %v1876 = vmul.f32 %v1777, %v1833
    %v1877 = vmul.f32 %v1781, %v1833
    %v1878 = vmul.f32 %v1777, %v1838
    %v1879 = vmul.f32 %v1781, %v1838
    %v1880 = vmul.f32 %v1785, %v1833
    %v1881 = vmul.f32 %v1789, %v1833
    %v1882 = vmul.f32 %v1785, %v1838
    %v1883 = vmul.f32 %v1789, %v1838
    %v1884 = vmul.f32 %v1793, %v1833
    %v1885 = vmul.f32 %v1797, %v1833
    %v1886 = vmul.f32 %v1793, %v1838
    %v1887 = vmul.f32 %v1797, %v1838
    %v1888 = vmul.f32 %v1801, %v1833
    %v1889 = vmul.f32 %v1805, %v1833
    %v1890 = vmul.f32 %v1801, %v1838
    %v1891 = vmul.f32 %v1805, %v1838
    %v1892 = vmul.f32 %v1809, %v1833
    %v1893 = vmul.f32 %v1813, %v1833
    %v1894 = vmul.f32 %v1809, %v1838
    %v1895 = vmul.f32 %v1813, %v1838
    %v1896 = vmul.f32 %v1817, %v1833
    %v1897 = vmul.f32 %v1821, %v1833
    %v1898 = vmul.f32 %v1817, %v1838
    %v1899 = vmul.f32 %v1821, %v1838
    %v1900 = vmul.f32 %v1825, %v1833
    %v1901 = vmul.f32 %v1829, %v1833
    %v1902 = vmul.f32 %v1825, %v1838
    %v1903 = vmul.f32 %v1829, %v1838
    %v1904 = vadd.f32 %v1478, %v1840
    %v1905 = vadd.f32 %v1479, %v1841
    %v1906 = vadd.f32 %v1480, %v1842
    %v1907 = vadd.f32 %v1481, %v1843
    %v1908 = vadd.f32 %v1482, %v1844
    %v1909 = vadd.f32 %v1483, %v1845
    %v1910 = vadd.f32 %v1484, %v1846
    %v1911 = vadd.f32 %v1485, %v1847
    %v1912 = vadd.f32 %v1486, %v1848
    %v1913 = vadd.f32 %v1487, %v1849
    %v1914 = vadd.f32 %v1488, %v1850
    %v1915 = vadd.f32 %v1489, %v1851
    %v1916 = vadd.f32 %v1490, %v1852
    %v1917 = vadd.f32 %v1491, %v1853
    %v1918 = vadd.f32 %v1492, %v1854
    %v1919 = vadd.f32 %v1493, %v1855
    %v1920 = vadd.f32 %v1494, %v1856
    %v1921 = vadd.f32 %v1495, %v1857
    %v1922 = vadd.f32 %v1496, %v1858
    %v1923 = vadd.f32 %v1497, %v1859
    %v1924 = vadd.f32 %v1498, %v1860
    %v1925 = vadd.f32 %v1499, %v1861
    %v1926 = vadd.f32 %v1500, %v1862
    %v1927 = vadd.f32 %v1501, %v1863
    %v1928 = vadd.f32 %v1502, %v1864
    %v1929 = vadd.f32 %v1503, %v1865
    %v1930 = vadd.f32 %v1504, %v1866
    %v1931 = vadd.f32 %v1505, %v1867
    %v1932 = vadd.f32 %v1506, %v1868
    %v1933 = vadd.f32 %v1507, %v1869
    %v1934 = vadd.f32 %v1508, %v1870
    %v1935 = vadd.f32 %v1509, %v1871
    %v1936 = vadd.f32 %v1510, %v1872
    %v1937 = vadd.f32 %v1511, %v1873
    %v1938 = vadd.f32 %v1512, %v1874
    %v1939 = vadd.f32 %v1513, %v1875
    %v1940 = vadd.f32 %v1514, %v1876
    %v1941 = vadd.f32 %v1515, %v1877
    %v1942 = vadd.f32 %v1516, %v1878
    %v1943 = vadd.f32 %v1517, %v1879
    %v1944 = vadd.f32 %v1518, %v1880
    %v1945 = vadd.f32 %v1519, %v1881
    %v1946 = vadd.f32 %v1520, %v1882
    %v1947 = vadd.f32 %v1521, %v1883
    %v1948 = vadd.f32 %v1522, %v1884
    %v1949 = vadd.f32 %v1523, %v1885
    %v1950 = vadd.f32 %v1524, %v1886
    %v1951 = vadd.f32 %v1525, %v1887
    %v1952 = vadd.f32 %v1526, %v1888
    %v1953 = vadd.f32 %v1527, %v1889
    %v1954 = vadd.f32 %v1528, %v1890
    %v1955 = vadd.f32 %v1529, %v1891
    %v1956 = vadd.f32 %v1530, %v1892
    %v1957 = vadd.f32 %v1531, %v1893
    %v1958 = vadd.f32 %v1532, %v1894
    %v1959 = vadd.f32 %v1533, %v1895
    %v1960 = vadd.f32 %v1534, %v1896
    %v1961 = vadd.f32 %v1535, %v1897
    %v1962 = vadd.f32 %v1536, %v1898
    %v1963 = vadd.f32 %v1537, %v1899
    %v1964 = vadd.f32 %v1538, %v1900
    %v1965 = vadd.f32 %v1539, %v1901
    %v1966 = vadd.f32 %v1540, %v1902
    %v1967 = vadd.f32 %v1541, %v1903
    %v1968 = vld [vmem:[%s7] sm:$0xff]
    %v1969 = vld [vmem:[%s7 + $0x8] sm:$0xff]
    %1971 = vset.pattern.permute.xlu0 0
    %1972 = vperm.xlu0 %1971, %v1968
    %v1973 = vpop.permute.xlu0 %1972
    %1976 = vset.pattern.permute.xlu0 0
    %1977 = vperm.xlu0 %1976, %v1969
    %v1978 = vpop.permute.xlu0 %1977
    %v1980 = vadd.f32 %v1904, %v1973
    %v1981 = vadd.f32 %v1905, %v1973
    %v1982 = vadd.f32 %v1906, %v1978
    %v1983 = vadd.f32 %v1907, %v1978
    %v1984 = vadd.f32 %v1908, %v1973
    %v1985 = vadd.f32 %v1909, %v1973
    %v1986 = vadd.f32 %v1910, %v1978
    %v1987 = vadd.f32 %v1911, %v1978
    %v1988 = vadd.f32 %v1912, %v1973
    %v1989 = vadd.f32 %v1913, %v1973
    %v1990 = vadd.f32 %v1914, %v1978
    %v1991 = vadd.f32 %v1915, %v1978
    %v1992 = vadd.f32 %v1916, %v1973
    %v1993 = vadd.f32 %v1917, %v1973
    %v1994 = vadd.f32 %v1918, %v1978
    %v1995 = vadd.f32 %v1919, %v1978
    %v1996 = vadd.f32 %v1920, %v1973
    %v1997 = vadd.f32 %v1921, %v1973
    %v1998 = vadd.f32 %v1922, %v1978
    %v1999 = vadd.f32 %v1923, %v1978
    %v2000 = vadd.f32 %v1924, %v1973
    %v2001 = vadd.f32 %v1925, %v1973
    %v2002 = vadd.f32 %v1926, %v1978
    %v2003 = vadd.f32 %v1927, %v1978
    %v2004 = vadd.f32 %v1928, %v1973
    %v2005 = vadd.f32 %v1929, %v1973
    %v2006 = vadd.f32 %v1930, %v1978
    %v2007 = vadd.f32 %v1931, %v1978
    %v2008 = vadd.f32 %v1932, %v1973
    %v2009 = vadd.f32 %v1933, %v1973
    %v2010 = vadd.f32 %v1934, %v1978
    %v2011 = vadd.f32 %v1935, %v1978
    %v2012 = vadd.f32 %v1936, %v1973
    %v2013 = vadd.f32 %v1937, %v1973
    %v2014 = vadd.f32 %v1938, %v1978
    %v2015 = vadd.f32 %v1939, %v1978
    %v2016 = vadd.f32 %v1940, %v1973
    %v2017 = vadd.f32 %v1941, %v1973
    %v2018 = vadd.f32 %v1942, %v1978
    %v2019 = vadd.f32 %v1943, %v1978
    %v2020 = vadd.f32 %v1944, %v1973
    %v2021 = vadd.f32 %v1945, %v1973
    %v2022 = vadd.f32 %v1946, %v1978
    %v2023 = vadd.f32 %v1947, %v1978
    %v2024 = vadd.f32 %v1948, %v1973
    %v2025 = vadd.f32 %v1949, %v1973
    %v2026 = vadd.f32 %v1950, %v1978
    %v2027 = vadd.f32 %v1951, %v1978
    %v2028 = vadd.f32 %v1952, %v1973
    %v2029 = vadd.f32 %v1953, %v1973
    %v2030 = vadd.f32 %v1954, %v1978
    %v2031 = vadd.f32 %v1955, %v1978
    %v2032 = vadd.f32 %v1956, %v1973
    %v2033 = vadd.f32 %v1957, %v1973
    %v2034 = vadd.f32 %v1958, %v1978
    %v2035 = vadd.f32 %v1959, %v1978
    %v2036 = vadd.f32 %v1960, %v1973
    %v2037 = vadd.f32 %v1961, %v1973
    %v2038 = vadd.f32 %v1962, %v1978
    %v2039 = vadd.f32 %v1963, %v1978
    %v2040 = vadd.f32 %v1964, %v1973
    %v2041 = vadd.f32 %v1965, %v1973
    %v2042 = vadd.f32 %v1966, %v1978
    %v2043 = vadd.f32 %v1967, %v1978
    %v2044 = vmax.f32 %v1980, 0.0
    %v2045 = vmax.f32 %v1981, 0.0
    %v2046 = vmax.f32 %v1982, 0.0
    %v2047 = vmax.f32 %v1983, 0.0
    %v2048 = vmax.f32 %v1984, 0.0
    %v2049 = vmax.f32 %v1985, 0.0
    %v2050 = vmax.f32 %v1986, 0.0
    %v2051 = vmax.f32 %v1987, 0.0
    %v2052 = vmax.f32 %v1988, 0.0
    %v2053 = vmax.f32 %v1989, 0.0
    %v2054 = vmax.f32 %v1990, 0.0
    %v2055 = vmax.f32 %v1991, 0.0
    %v2056 = vmax.f32 %v1992, 0.0
    %v2057 = vmax.f32 %v1993, 0.0
    %v2058 = vmax.f32 %v1994, 0.0
    %v2059 = vmax.f32 %v1995, 0.0
    %v2060 = vmax.f32 %v1996, 0.0
    %v2061 = vmax.f32 %v1997, 0.0
    %v2062 = vmax.f32 %v1998, 0.0
    %v2063 = vmax.f32 %v1999, 0.0
    %v2064 = vmax.f32 %v2000, 0.0
    %v2065 = vmax.f32 %v2001, 0.0
    %v2066 = vmax.f32 %v2002, 0.0
    %v2067 = vmax.f32 %v2003, 0.0
    %v2068 = vmax.f32 %v2004, 0.0
    %v2069 = vmax.f32 %v2005, 0.0
    %v2070 = vmax.f32 %v2006, 0.0
    %v2071 = vmax.f32 %v2007, 0.0
    %v2072 = vmax.f32 %v2008, 0.0
    %v2073 = vmax.f32 %v2009, 0.0
    %v2074 = vmax.f32 %v2010, 0.0
    %v2075 = vmax.f32 %v2011, 0.0
    %v2076 = vmax.f32 %v2012, 0.0
    %v2077 = vmax.f32 %v2013, 0.0
    %v2078 = vmax.f32 %v2014, 0.0
    %v2079 = vmax.f32 %v2015, 0.0
    %v2080 = vmax.f32 %v2016, 0.0
    %v2081 = vmax.f32 %v2017, 0.0
    %v2082 = vmax.f32 %v2018, 0.0
    %v2083 = vmax.f32 %v2019, 0.0
    %v2084 = vmax.f32 %v2020, 0.0
    %v2085 = vmax.f32 %v2021, 0.0
    %v2086 = vmax.f32 %v2022, 0.0
    %v2087 = vmax.f32 %v2023, 0.0
    %v2088 = vmax.f32 %v2024, 0.0
    %v2089 = vmax.f32 %v2025, 0.0
    %v2090 = vmax.f32 %v2026, 0.0
    %v2091 = vmax.f32 %v2027, 0.0
    %v2092 = vmax.f32 %v2028, 0.0
    %v2093 = vmax.f32 %v2029, 0.0
    %v2094 = vmax.f32 %v2030, 0.0
    %v2095 = vmax.f32 %v2031, 0.0
    %v2096 = vmax.f32 %v2032, 0.0
    %v2097 = vmax.f32 %v2033, 0.0
    %v2098 = vmax.f32 %v2034, 0.0
    %v2099 = vmax.f32 %v2035, 0.0
    %v2100 = vmax.f32 %v2036, 0.0
    %v2101 = vmax.f32 %v2037, 0.0
    %v2102 = vmax.f32 %v2038, 0.0
    %v2103 = vmax.f32 %v2039, 0.0
    %v2104 = vmax.f32 %v2040, 0.0
    %v2105 = vmax.f32 %v2041, 0.0
    %v2106 = vmax.f32 %v2042, 0.0
    %v2107 = vmax.f32 %v2043, 0.0
    %v2108 = vadd.f32 %v2044, %v2045
    %2109 = vadd.xlane.f32.xlu0 %v2108
    %v2110 = vpop.xlane.xlu0 %2109
    %v2111 = vadd.f32 %v2046, %v2047
    %2112 = vadd.xlane.f32.xlu0 %v2111
    %v2113 = vpop.xlane.xlu0 %2112
    %v2114 = vadd.f32 %v2048, %v2049
    %2115 = vadd.xlane.f32.xlu0 %v2114
    %v2116 = vpop.xlane.xlu0 %2115
    %v2117 = vadd.f32 %v2050, %v2051
    %2118 = vadd.xlane.f32.xlu0 %v2117
    %v2119 = vpop.xlane.xlu0 %2118
    %v2120 = vadd.f32 %v2052, %v2053
    %2121 = vadd.xlane.f32.xlu0 %v2120
    %v2122 = vpop.xlane.xlu0 %2121
    %v2123 = vadd.f32 %v2054, %v2055
    %2124 = vadd.xlane.f32.xlu0 %v2123
    %v2125 = vpop.xlane.xlu0 %2124
    %v2126 = vadd.f32 %v2056, %v2057
    %2127 = vadd.xlane.f32.xlu0 %v2126
    %v2128 = vpop.xlane.xlu0 %2127
    %v2129 = vadd.f32 %v2058, %v2059
    %2130 = vadd.xlane.f32.xlu0 %v2129
    %v2131 = vpop.xlane.xlu0 %2130
    %v2132 = vadd.f32 %v2060, %v2061
    %2133 = vadd.xlane.f32.xlu0 %v2132
    %v2134 = vpop.xlane.xlu0 %2133
    %v2135 = vadd.f32 %v2062, %v2063
    %2136 = vadd.xlane.f32.xlu0 %v2135
    %v2137 = vpop.xlane.xlu0 %2136
    %v2138 = vadd.f32 %v2064, %v2065
    %2139 = vadd.xlane.f32.xlu0 %v2138
    %v2140 = vpop.xlane.xlu0 %2139
    %v2141 = vadd.f32 %v2066, %v2067
    %2142 = vadd.xlane.f32.xlu0 %v2141
    %v2143 = vpop.xlane.xlu0 %2142
    %v2144 = vadd.f32 %v2068, %v2069
    %2145 = vadd.xlane.f32.xlu0 %v2144
    %v2146 = vpop.xlane.xlu0 %2145
    %v2147 = vadd.f32 %v2070, %v2071
    %2148 = vadd.xlane.f32.xlu0 %v2147
    %v2149 = vpop.xlane.xlu0 %2148
    %v2150 = vadd.f32 %v2072, %v2073
    %2151 = vadd.xlane.f32.xlu0 %v2150
    %v2152 = vpop.xlane.xlu0 %2151
    %v2153 = vadd.f32 %v2074, %v2075
    %2154 = vadd.xlane.f32.xlu0 %v2153
    %v2155 = vpop.xlane.xlu0 %2154
    %v2156 = vadd.f32 %v2076, %v2077
    %2157 = vadd.xlane.f32.xlu0 %v2156
    %v2158 = vpop.xlane.xlu0 %2157
    %v2159 = vadd.f32 %v2078, %v2079
    %2160 = vadd.xlane.f32.xlu0 %v2159
    %v2161 = vpop.xlane.xlu0 %2160
    %v2162 = vadd.f32 %v2080, %v2081
    %2163 = vadd.xlane.f32.xlu0 %v2162
    %v2164 = vpop.xlane.xlu0 %2163
    %v2165 = vadd.f32 %v2082, %v2083
    %2166 = vadd.xlane.f32.xlu0 %v2165
    %v2167 = vpop.xlane.xlu0 %2166
    %v2168 = vadd.f32 %v2084, %v2085
    %2169 = vadd.xlane.f32.xlu0 %v2168
    %v2170 = vpop.xlane.xlu0 %2169
    %v2171 = vadd.f32 %v2086, %v2087
    %2172 = vadd.xlane.f32.xlu0 %v2171
    %v2173 = vpop.xlane.xlu0 %2172
    %v2174 = vadd.f32 %v2088, %v2089
    %2175 = vadd.xlane.f32.xlu0 %v2174
    %v2176 = vpop.xlane.xlu0 %2175
    %v2177 = vadd.f32 %v2090, %v2091
    %2178 = vadd.xlane.f32.xlu0 %v2177
    %v2179 = vpop.xlane.xlu0 %2178
    %v2180 = vadd.f32 %v2092, %v2093
    %2181 = vadd.xlane.f32.xlu0 %v2180
    %v2182 = vpop.xlane.xlu0 %2181
    %v2183 = vadd.f32 %v2094, %v2095
    %2184 = vadd.xlane.f32.xlu0 %v2183
    %v2185 = vpop.xlane.xlu0 %2184
    %v2186 = vadd.f32 %v2096, %v2097
    %2187 = vadd.xlane.f32.xlu0 %v2186
    %v2188 = vpop.xlane.xlu0 %2187
    %v2189 = vadd.f32 %v2098, %v2099
    %2190 = vadd.xlane.f32.xlu0 %v2189
    %v2191 = vpop.xlane.xlu0 %2190
    %v2192 = vadd.f32 %v2100, %v2101
    %2193 = vadd.xlane.f32.xlu0 %v2192
    %v2194 = vpop.xlane.xlu0 %2193
    %v2195 = vadd.f32 %v2102, %v2103
    %2196 = vadd.xlane.f32.xlu0 %v2195
    %v2197 = vpop.xlane.xlu0 %2196
    %v2198 = vadd.f32 %v2104, %v2105
    %2199 = vadd.xlane.f32.xlu0 %v2198
    %v2200 = vpop.xlane.xlu0 %2199
    %v2201 = vadd.f32 %v2106, %v2107
    %2202 = vadd.xlane.f32.xlu0 %v2201
    %v2203 = vpop.xlane.xlu0 %2202
    %v2204 = vrcp.pop 256.0
    %v2205 = vmul.f32 %v2110, %v2204
    %v2206 = vmul.f32 %v2113, %v2204
    %v2207 = vmul.f32 %v2116, %v2204
    %v2208 = vmul.f32 %v2119, %v2204
    %v2209 = vmul.f32 %v2122, %v2204
    %v2210 = vmul.f32 %v2125, %v2204
    %v2211 = vmul.f32 %v2128, %v2204
    %v2212 = vmul.f32 %v2131, %v2204
    %v2213 = vmul.f32 %v2134, %v2204
    %v2214 = vmul.f32 %v2137, %v2204
    %v2215 = vmul.f32 %v2140, %v2204
    %v2216 = vmul.f32 %v2143, %v2204
    %v2217 = vmul.f32 %v2146, %v2204
    %v2218 = vmul.f32 %v2149, %v2204
    %v2219 = vmul.f32 %v2152, %v2204
    %v2220 = vmul.f32 %v2155, %v2204
    %v2221 = vmul.f32 %v2158, %v2204
    %v2222 = vmul.f32 %v2161, %v2204
    %v2223 = vmul.f32 %v2164, %v2204
    %v2224 = vmul.f32 %v2167, %v2204
    %v2225 = vmul.f32 %v2170, %v2204
    %v2226 = vmul.f32 %v2173, %v2204
    %v2227 = vmul.f32 %v2176, %v2204
    %v2228 = vmul.f32 %v2179, %v2204
    %v2229 = vmul.f32 %v2182, %v2204
    %v2230 = vmul.f32 %v2185, %v2204
    %v2231 = vmul.f32 %v2188, %v2204
    %v2232 = vmul.f32 %v2191, %v2204
    %v2233 = vmul.f32 %v2194, %v2204
    %v2234 = vmul.f32 %v2197, %v2204
    %v2235 = vmul.f32 %v2200, %v2204
    %v2236 = vmul.f32 %v2203, %v2204
    %v2237 = vld [vmem:[%s8] sm:$0xff]
    %v2238 = vld [vmem:[%s8 + $0x8] sm:$0xff]
    %v2239 = vld [vmem:[%s10] sm:$0x1]
    %v2241 = vlaneseq
    %v2242 = vshrl.u32 %v2241, 7
    %v2243 = vsub.s32 0, %v2242
    %v2244 = vrot.slane %v2239, %v2243
    %v2278 = vlaneseq
    %v2279 = vand.u32 %v2278, 127
    %v2280 = vlaneseq
    %v2281 = vshrl.u32 %v2280, 7
    %v2282 = vsub.s32 %v2279, %v2281
    %v2283 = vrot.slane %v2205, %v2282
    %v2284 = vadd.s32 %v2279, 4294967288
    %v2285 = vlaneseq
    %v2286 = vshrl.u32 %v2285, 7
    %v2287 = vsub.s32 %v2284, %v2286
    %v2288 = vrot.slane %v2206, %v2287
    %vm2289 = vcmask 130112
    %v2290 = vsel %vm2289, %v2288, %v2283
    %v2291 = vlaneseq
    %v2292 = vshrl.u32 %v2291, 7
    %v2293 = vsub.s32 %v2279, %v2292
    %v2294 = vrot.slane %v2207, %v2293
    %v2295 = vlaneseq
    %v2296 = vshrl.u32 %v2295, 7
    %v2297 = vsub.s32 %v2284, %v2296
    %v2298 = vrot.slane %v2208, %v2297
    %v2299 = vsel %vm2289, %v2298, %v2294
    %v2300 = vlaneseq
    %v2301 = vshrl.u32 %v2300, 7
    %v2302 = vsub.s32 %v2279, %v2301
    %v2303 = vrot.slane %v2209, %v2302
    %v2304 = vlaneseq
    %v2305 = vshrl.u32 %v2304, 7
    %v2306 = vsub.s32 %v2284, %v2305
    %v2307 = vrot.slane %v2210, %v2306
    %v2308 = vsel %vm2289, %v2307, %v2303
    %v2309 = vlaneseq
    %v2310 = vshrl.u32 %v2309, 7
    %v2311 = vsub.s32 %v2279, %v2310
    %v2312 = vrot.slane %v2211, %v2311
    %v2313 = vlaneseq
    %v2314 = vshrl.u32 %v2313, 7
    %v2315 = vsub.s32 %v2284, %v2314
    %v2316 = vrot.slane %v2212, %v2315
    %v2317 = vsel %vm2289, %v2316, %v2312
    %v2318 = vlaneseq
    %v2319 = vshrl.u32 %v2318, 7
    %v2320 = vsub.s32 %v2279, %v2319
    %v2321 = vrot.slane %v2213, %v2320
    %v2322 = vlaneseq
    %v2323 = vshrl.u32 %v2322, 7
    %v2324 = vsub.s32 %v2284, %v2323
    %v2325 = vrot.slane %v2214, %v2324
    %v2326 = vsel %vm2289, %v2325, %v2321
    %v2327 = vlaneseq
    %v2328 = vshrl.u32 %v2327, 7
    %v2329 = vsub.s32 %v2279, %v2328
    %v2330 = vrot.slane %v2215, %v2329
    %v2331 = vlaneseq
    %v2332 = vshrl.u32 %v2331, 7
    %v2333 = vsub.s32 %v2284, %v2332
    %v2334 = vrot.slane %v2216, %v2333
    %v2335 = vsel %vm2289, %v2334, %v2330
    %v2336 = vlaneseq
    %v2337 = vshrl.u32 %v2336, 7
    %v2338 = vsub.s32 %v2279, %v2337
    %v2339 = vrot.slane %v2217, %v2338
    %v2340 = vlaneseq
    %v2341 = vshrl.u32 %v2340, 7
    %v2342 = vsub.s32 %v2284, %v2341
    %v2343 = vrot.slane %v2218, %v2342
    %v2344 = vsel %vm2289, %v2343, %v2339
    %v2345 = vlaneseq
    %v2346 = vshrl.u32 %v2345, 7
    %v2347 = vsub.s32 %v2279, %v2346
    %v2348 = vrot.slane %v2219, %v2347
    %v2349 = vlaneseq
    %v2350 = vshrl.u32 %v2349, 7
    %v2351 = vsub.s32 %v2284, %v2350
    %v2352 = vrot.slane %v2220, %v2351
    %v2353 = vsel %vm2289, %v2352, %v2348
    %v2354 = vlaneseq
    %v2355 = vshrl.u32 %v2354, 7
    %v2356 = vsub.s32 %v2279, %v2355
    %v2357 = vrot.slane %v2221, %v2356
    %v2358 = vlaneseq
    %v2359 = vshrl.u32 %v2358, 7
    %v2360 = vsub.s32 %v2284, %v2359
    %v2361 = vrot.slane %v2222, %v2360
    %v2362 = vsel %vm2289, %v2361, %v2357
    %v2363 = vlaneseq
    %v2364 = vshrl.u32 %v2363, 7
    %v2365 = vsub.s32 %v2279, %v2364
    %v2366 = vrot.slane %v2223, %v2365
    %v2367 = vlaneseq
    %v2368 = vshrl.u32 %v2367, 7
    %v2369 = vsub.s32 %v2284, %v2368
    %v2370 = vrot.slane %v2224, %v2369
    %v2371 = vsel %vm2289, %v2370, %v2366
    %v2372 = vlaneseq
    %v2373 = vshrl.u32 %v2372, 7
    %v2374 = vsub.s32 %v2279, %v2373
    %v2375 = vrot.slane %v2225, %v2374
    %v2376 = vlaneseq
    %v2377 = vshrl.u32 %v2376, 7
    %v2378 = vsub.s32 %v2284, %v2377
    %v2379 = vrot.slane %v2226, %v2378
    %v2380 = vsel %vm2289, %v2379, %v2375
    %v2381 = vlaneseq
    %v2382 = vshrl.u32 %v2381, 7
    %v2383 = vsub.s32 %v2279, %v2382
    %v2384 = vrot.slane %v2227, %v2383
    %v2385 = vlaneseq
    %v2386 = vshrl.u32 %v2385, 7
    %v2387 = vsub.s32 %v2284, %v2386
    %v2388 = vrot.slane %v2228, %v2387
    %v2389 = vsel %vm2289, %v2388, %v2384
    %v2390 = vlaneseq
    %v2391 = vshrl.u32 %v2390, 7
    %v2392 = vsub.s32 %v2279, %v2391
    %v2393 = vrot.slane %v2229, %v2392
    %v2394 = vlaneseq
    %v2395 = vshrl.u32 %v2394, 7
    %v2396 = vsub.s32 %v2284, %v2395
    %v2397 = vrot.slane %v2230, %v2396
    %v2398 = vsel %vm2289, %v2397, %v2393
    %v2399 = vlaneseq
    %v2400 = vshrl.u32 %v2399, 7
    %v2401 = vsub.s32 %v2279, %v2400
    %v2402 = vrot.slane %v2231, %v2401
    %v2403 = vlaneseq
    %v2404 = vshrl.u32 %v2403, 7
    %v2405 = vsub.s32 %v2284, %v2404
    %v2406 = vrot.slane %v2232, %v2405
    %v2407 = vsel %vm2289, %v2406, %v2402
    %v2408 = vlaneseq
    %v2409 = vshrl.u32 %v2408, 7
    %v2410 = vsub.s32 %v2279, %v2409
    %v2411 = vrot.slane %v2233, %v2410
    %v2412 = vlaneseq
    %v2413 = vshrl.u32 %v2412, 7
    %v2414 = vsub.s32 %v2284, %v2413
    %v2415 = vrot.slane %v2234, %v2414
    %v2416 = vsel %vm2289, %v2415, %v2411
    %v2417 = vlaneseq
    %v2418 = vshrl.u32 %v2417, 7
    %v2419 = vsub.s32 %v2279, %v2418
    %v2420 = vrot.slane %v2235, %v2419
    %v2421 = vlaneseq
    %v2422 = vshrl.u32 %v2421, 7
    %v2423 = vsub.s32 %v2284, %v2422
    %v2424 = vrot.slane %v2236, %v2423
    %v2425 = vsel %vm2289, %v2424, %v2420
    %vm2426 = vcmask 1041409
    %v2427 = vsel %vm2426, %v2299, %v2290
    %vm2428 = vcmask 1042434
    %v2429 = vsel %vm2428, %v2308, %v2427
    %vm2430 = vcmask 1043459
    %v2431 = vsel %vm2430, %v2317, %v2429
    %vm2432 = vcmask 1044484
    %v2433 = vsel %vm2432, %v2326, %v2431
    %vm2434 = vcmask 1045509
    %v2435 = vsel %vm2434, %v2335, %v2433
    %vm2436 = vcmask 1046534
    %v2437 = vsel %vm2436, %v2344, %v2435
    %vm2438 = vcmask 1047559
    %v2439 = vsel %vm2438, %v2353, %v2437
    %v2440 = vsel %vm2426, %v2371, %v2362
    %v2441 = vsel %vm2428, %v2380, %v2440
    %v2442 = vsel %vm2430, %v2389, %v2441
    %v2443 = vsel %vm2432, %v2398, %v2442
    %v2444 = vsel %vm2434, %v2407, %v2443
    %v2445 = vsel %vm2436, %v2416, %v2444
    %v2446 = vsel %vm2438, %v2425, %v2445
    %vm2447 = vcmask 130048
    %v2448 = vsel %vm2447, %v2439, 0
    %v2450 = vsel %vm2447, %v2446, 0
    %2452 = vmatprep.subr.mxu0 0.0
    %2453 = vmatpush1.msra.mxu0 0.0
    %2454 = vmatprep.subr.mxu0 0.0
    %2455 = vmatpush1.msra.mxu0 0.0
    %2456 = vmatprep.subr.mxu0 0.0
    %2457 = vmatpush1.msra.mxu0 0.0
    %2458 = vmatprep.subr.mxu0 0.0
    %2459 = vmatpush1.msra.mxu0 0.0
    %2460 = vmatprep.subr.mxu0 0.0
    %2461 = vmatpush1.msra.mxu0 0.0
    %2462 = vmatprep.subr.mxu0 0.0
    %2463 = vmatpush1.msra.mxu0 0.0
    %2464 = vmatprep.subr.mxu0 0.0
    %2465 = vmatpush1.msra.mxu0 0.0
    %2466 = vmatprep.subr.mxu0 0.0
    %2467 = vmatpush1.msra.mxu0 0.0
    %2468 = vmatprep.subr.mxu0 0.0
    %2469 = vmatpush1.msra.mxu0 0.0
    %2470 = vmatprep.subr.mxu0 0.0
    %2471 = vmatpush1.msra.mxu0 0.0
    %2472 = vmatprep.subr.mxu0 0.0
    %2473 = vmatpush1.msra.mxu0 0.0
    %2474 = vmatprep.subr.mxu0 0.0
    %2475 = vmatpush1.msra.mxu0 0.0
    %2476 = vmatprep.subr.mxu0 0.0
    %2477 = vmatpush1.msra.mxu0 0.0
    %2478 = vmatprep.subr.mxu0 0.0
    %2479 = vmatpush1.msra.mxu0 0.0
    %2480 = vmatprep.subr.mxu0 0.0
    %2481 = vmatpush1.msra.mxu0 %v2238
    %2482 = vmatprep.subr.mxu0 0.0
    %2483 = vmatpush1.msra.mxu0 %v2237
    %2484 = vmatprep.subr.mxu0 0.0
    %2485 = vmatpush2.msra.mxu0 0.0
    %2486 = vmatprep.subr.mxu0 0.0
    %2487 = vmatpush2.msra.mxu0 0.0
    %2488 = vmatprep.subr.mxu0 0.0
    %2489 = vmatpush2.msra.mxu0 0.0
    %2490 = vmatprep.subr.mxu0 0.0
    %2491 = vmatpush2.msra.mxu0 0.0
    %2492 = vmatprep.subr.mxu0 0.0
    %2493 = vmatpush2.msra.mxu0 0.0
    %2494 = vmatprep.subr.mxu0 0.0
    %2495 = vmatpush2.msra.mxu0 0.0
    %2496 = vmatprep.subr.mxu0 0.0
    %2497 = vmatpush2.msra.mxu0 0.0
    %2498 = vmatprep.subr.mxu0 0.0
    %2499 = vmatpush2.msra.mxu0 0.0
    %2500 = vmatprep.subr.mxu0 0.0
    %2501 = vmatpush2.msra.mxu0 0.0
    %2502 = vmatprep.subr.mxu0 0.0
    %2503 = vmatpush2.msra.mxu0 0.0
    %2504 = vmatprep.subr.mxu0 0.0
    %2505 = vmatpush2.msra.mxu0 0.0
    %2506 = vmatprep.subr.mxu0 0.0
    %2507 = vmatpush2.msra.mxu0 0.0
    %2508 = vmatprep.subr.mxu0 0.0
    %2509 = vmatpush2.msra.mxu0 0.0
    %2510 = vmatprep.subr.mxu0 0.0
    %2511 = vmatpush2.msra.mxu0 0.0
    %2512 = vmatprep.subr.mxu0 0.0
    %2513 = vmatpush2.msra.mxu0 0.0
    %2514 = vmatprep.subr.mxu0 0.0
    %2515 = vmatpush2.msra.mxu0 0.0
    %2516 = vmatprep.mubr.f32.mxu0 0.0
    %2517 = vmatmul.mubr.f32.gmra.mxu0 %v2448
    %v2518 = vpop.f32.mrf.mxu0
    %v2519 = vadd.f32 %v2244, %v2518
    %v2520 = vpop.f32.mrf.mxu0
    %2521 = vmatprep.mubr.f32.mxu0 0.0
    %2522 = vmatmul.mubr.f32.gmra.mxu0 %v2450
    %v2523 = vpop.f32.mrf.mxu0
    %v2524 = vadd.f32 %v2244, %v2523
    %v2525 = vpop.f32.mrf.mxu0
    %2526 = vdwg.mxu0
    %v2527 = vld [vmem:[%s9] sm:$0xff]
    %v2528 = vld [vmem:[%s9 + $0x8] sm:$0xff]
    %v2529 = vld [vmem:[%s9 + $0x10] sm:$0xff]
    %v2530 = vld [vmem:[%s9 + $0x18] sm:$0xff]
    %vm2531 = vcmask 261120
    %v2533 = vsel %vm2531, 0.0, 0
    %2535 = vmatprep.subr.mxu0 0.0
    %2536 = vmatpush1.msra.mxu0 0.0
    %2537 = vmatprep.subr.mxu0 0.0
    %2538 = vmatpush1.msra.mxu0 0.0
    %2539 = vmatprep.subr.mxu0 0.0
    %2540 = vmatpush1.msra.mxu0 0.0
    %2541 = vmatprep.subr.mxu0 0.0
    %2542 = vmatpush1.msra.mxu0 0.0
    %2543 = vmatprep.subr.mxu0 0.0
    %2544 = vmatpush1.msra.mxu0 0.0
    %2545 = vmatprep.subr.mxu0 0.0
    %2546 = vmatpush1.msra.mxu0 0.0
    %2547 = vmatprep.subr.mxu0 0.0
    %2548 = vmatpush1.msra.mxu0 0.0
    %2549 = vmatprep.subr.mxu0 0.0
    %2550 = vmatpush1.msra.mxu0 0.0
    %2551 = vmatprep.subr.mxu0 0.0
    %2552 = vmatpush1.msra.mxu0 0.0
    %2553 = vmatprep.subr.mxu0 0.0
    %2554 = vmatpush1.msra.mxu0 0.0
    %2555 = vmatprep.subr.mxu0 0.0
    %2556 = vmatpush1.msra.mxu0 0.0
    %2557 = vmatprep.subr.mxu0 0.0
    %2558 = vmatpush1.msra.mxu0 0.0
    %2559 = vmatprep.subr.mxu0 0.0
    %2560 = vmatpush1.msra.mxu0 %v2530
    %2561 = vmatprep.subr.mxu0 0.0
    %2562 = vmatpush1.msra.mxu0 %v2529
    %2563 = vmatprep.subr.mxu0 0.0
    %2564 = vmatpush1.msra.mxu0 %v2528
    %2565 = vmatprep.subr.mxu0 0.0
    %2566 = vmatpush1.msra.mxu0 %v2527
    %2567 = vmatprep.subr.mxu0 0.0
    %2568 = vmatpush2.msra.mxu0 0.0
    %2569 = vmatprep.subr.mxu0 0.0
    %2570 = vmatpush2.msra.mxu0 0.0
    %2571 = vmatprep.subr.mxu0 0.0
    %2572 = vmatpush2.msra.mxu0 0.0
    %2573 = vmatprep.subr.mxu0 0.0
    %2574 = vmatpush2.msra.mxu0 0.0
    %2575 = vmatprep.subr.mxu0 0.0
    %2576 = vmatpush2.msra.mxu0 0.0
    %2577 = vmatprep.subr.mxu0 0.0
    %2578 = vmatpush2.msra.mxu0 0.0
    %2579 = vmatprep.subr.mxu0 0.0
    %2580 = vmatpush2.msra.mxu0 0.0
    %2581 = vmatprep.subr.mxu0 0.0
    %2582 = vmatpush2.msra.mxu0 0.0
    %2583 = vmatprep.subr.mxu0 0.0
    %2584 = vmatpush2.msra.mxu0 0.0
    %2585 = vmatprep.subr.mxu0 0.0
    %2586 = vmatpush2.msra.mxu0 0.0
    %2587 = vmatprep.subr.mxu0 0.0
    %2588 = vmatpush2.msra.mxu0 0.0
    %2589 = vmatprep.subr.mxu0 0.0
    %2590 = vmatpush2.msra.mxu0 0.0
    %2591 = vmatprep.subr.mxu0 0.0
    %2592 = vmatpush2.msra.mxu0 0.0
    %2593 = vmatprep.subr.mxu0 0.0
    %2594 = vmatpush2.msra.mxu0 0.0
    %2595 = vmatprep.subr.mxu0 0.0
    %2596 = vmatpush2.msra.mxu0 0.0
    %2597 = vmatprep.subr.mxu0 0.0
    %2598 = vmatpush2.msra.mxu0 0.0
    %2599 = vmatprep.mubr.f32.mxu0 0.0
    %2600 = vmatmul.mubr.f32.gmra.mxu0 %v2533
    %v2601 = vpop.f32.mrf.mxu0
    %v2602 = vadd.f32 0.0, %v2601
    %v2603 = vpop.f32.mrf.mxu0
    %2604 = vdwg.mxu0
    %v2606 = vrot.slane %v2602, 1
    %v2609 = vadd.f32 %v2519, %v2602
    %v2610 = vadd.f32 %v2524, %v2606
    %v2611 = vtanh.pop %v2609
    %v2612 = vtanh.pop %v2610
    %v2615 = vrot.slane %v2612, 7
    %v2616 = vsel %vm2426, %v2615, %v2611
    %v2617 = vsel %vm2531, %v2616, 0
    %2619 = vmatprep.subr.mxu0 0.0
    %2620 = vmatpush1.msra.mxu0 0.0
    %2621 = vmatprep.subr.mxu0 0.0
    %2622 = vmatpush1.msra.mxu0 0.0
    %2623 = vmatprep.subr.mxu0 0.0
    %2624 = vmatpush1.msra.mxu0 0.0
    %2625 = vmatprep.subr.mxu0 0.0
    %2626 = vmatpush1.msra.mxu0 0.0
    %2627 = vmatprep.subr.mxu0 0.0
    %2628 = vmatpush1.msra.mxu0 0.0
    %2629 = vmatprep.subr.mxu0 0.0
    %2630 = vmatpush1.msra.mxu0 0.0
    %2631 = vmatprep.subr.mxu0 0.0
    %2632 = vmatpush1.msra.mxu0 0.0
    %2633 = vmatprep.subr.mxu0 0.0
    %2634 = vmatpush1.msra.mxu0 0.0
    %2635 = vmatprep.subr.mxu0 0.0
    %2636 = vmatpush1.msra.mxu0 0.0
    %2637 = vmatprep.subr.mxu0 0.0
    %2638 = vmatpush1.msra.mxu0 0.0
    %2639 = vmatprep.subr.mxu0 0.0
    %2640 = vmatpush1.msra.mxu0 0.0
    %2641 = vmatprep.subr.mxu0 0.0
    %2642 = vmatpush1.msra.mxu0 0.0
    %2643 = vmatprep.subr.mxu0 0.0
    %2644 = vmatpush1.msra.mxu0 %v2530
    %2645 = vmatprep.subr.mxu0 0.0
    %2646 = vmatpush1.msra.mxu0 %v2529
    %2647 = vmatprep.subr.mxu0 0.0
    %2648 = vmatpush1.msra.mxu0 %v2528
    %2649 = vmatprep.subr.mxu0 0.0
    %2650 = vmatpush1.msra.mxu0 %v2527
    %2651 = vmatprep.subr.mxu0 0.0
    %2652 = vmatpush2.msra.mxu0 0.0
    %2653 = vmatprep.subr.mxu0 0.0
    %2654 = vmatpush2.msra.mxu0 0.0
    %2655 = vmatprep.subr.mxu0 0.0
    %2656 = vmatpush2.msra.mxu0 0.0
    %2657 = vmatprep.subr.mxu0 0.0
    %2658 = vmatpush2.msra.mxu0 0.0
    %2659 = vmatprep.subr.mxu0 0.0
    %2660 = vmatpush2.msra.mxu0 0.0
    %2661 = vmatprep.subr.mxu0 0.0
    %2662 = vmatpush2.msra.mxu0 0.0
    %2663 = vmatprep.subr.mxu0 0.0
    %2664 = vmatpush2.msra.mxu0 0.0
    %2665 = vmatprep.subr.mxu0 0.0
    %2666 = vmatpush2.msra.mxu0 0.0
    %2667 = vmatprep.subr.mxu0 0.0
    %2668 = vmatpush2.msra.mxu0 0.0
    %2669 = vmatprep.subr.mxu0 0.0
    %2670 = vmatpush2.msra.mxu0 0.0
    %2671 = vmatprep.subr.mxu0 0.0
    %2672 = vmatpush2.msra.mxu0 0.0
    %2673 = vmatprep.subr.mxu0 0.0
    %2674 = vmatpush2.msra.mxu0 0.0
    %2675 = vmatprep.subr.mxu0 0.0
    %2676 = vmatpush2.msra.mxu0 0.0
    %2677 = vmatprep.subr.mxu0 0.0
    %2678 = vmatpush2.msra.mxu0 0.0
    %2679 = vmatprep.subr.mxu0 0.0
    %2680 = vmatpush2.msra.mxu0 0.0
    %2681 = vmatprep.subr.mxu0 0.0
    %2682 = vmatpush2.msra.mxu0 0.0
    %2683 = vmatprep.mubr.f32.mxu0 0.0
    %2684 = vmatmul.mubr.f32.gmra.mxu0 %v2617
    %v2685 = vpop.f32.mrf.mxu0
    %v2686 = vadd.f32 0.0, %v2685
    %v2687 = vpop.f32.mrf.mxu0
    %2688 = vdwg.mxu0
    %v2690 = vrot.slane %v2686, 7
    %v2693 = vadd.f32 %v2519, %v2690
    %v2694 = vadd.f32 %v2524, %v2686
    %v2695 = vtanh.pop %v2693
    %v2696 = vtanh.pop %v2694
    %v2699 = vrot.slane %v2695, 1
    %v2700 = vsel %vm2426, %v2696, %v2699
    %v2701 = vsel %vm2531, %v2700, 0
    %2703 = vmatprep.subr.mxu0 0.0
    %2704 = vmatpush1.msra.mxu0 0.0
    %2705 = vmatprep.subr.mxu0 0.0
    %2706 = vmatpush1.msra.mxu0 0.0
    %2707 = vmatprep.subr.mxu0 0.0
    %2708 = vmatpush1.msra.mxu0 0.0
    %2709 = vmatprep.subr.mxu0 0.0
    %2710 = vmatpush1.msra.mxu0 0.0
    %2711 = vmatprep.subr.mxu0 0.0
    %2712 = vmatpush1.msra.mxu0 0.0
    %2713 = vmatprep.subr.mxu0 0.0
    %2714 = vmatpush1.msra.mxu0 0.0
    %2715 = vmatprep.subr.mxu0 0.0
    %2716 = vmatpush1.msra.mxu0 0.0
    %2717 = vmatprep.subr.mxu0 0.0
    %2718 = vmatpush1.msra.mxu0 0.0
    %2719 = vmatprep.subr.mxu0 0.0
    %2720 = vmatpush1.msra.mxu0 0.0
    %2721 = vmatprep.subr.mxu0 0.0
    %2722 = vmatpush1.msra.mxu0 0.0
    %2723 = vmatprep.subr.mxu0 0.0
    %2724 = vmatpush1.msra.mxu0 0.0
    %2725 = vmatprep.subr.mxu0 0.0
    %2726 = vmatpush1.msra.mxu0 0.0
    %2727 = vmatprep.subr.mxu0 0.0
    %2728 = vmatpush1.msra.mxu0 %v2530
    %2729 = vmatprep.subr.mxu0 0.0
    %2730 = vmatpush1.msra.mxu0 %v2529
    %2731 = vmatprep.subr.mxu0 0.0
    %2732 = vmatpush1.msra.mxu0 %v2528
    %2733 = vmatprep.subr.mxu0 0.0
    %2734 = vmatpush1.msra.mxu0 %v2527
    %2735 = vmatprep.subr.mxu0 0.0
    %2736 = vmatpush2.msra.mxu0 0.0
    %2737 = vmatprep.subr.mxu0 0.0
    %2738 = vmatpush2.msra.mxu0 0.0
    %2739 = vmatprep.subr.mxu0 0.0
    %2740 = vmatpush2.msra.mxu0 0.0
    %2741 = vmatprep.subr.mxu0 0.0
    %2742 = vmatpush2.msra.mxu0 0.0
    %2743 = vmatprep.subr.mxu0 0.0
    %2744 = vmatpush2.msra.mxu0 0.0
    %2745 = vmatprep.subr.mxu0 0.0
    %2746 = vmatpush2.msra.mxu0 0.0
    %2747 = vmatprep.subr.mxu0 0.0
    %2748 = vmatpush2.msra.mxu0 0.0
    %2749 = vmatprep.subr.mxu0 0.0
    %2750 = vmatpush2.msra.mxu0 0.0
    %2751 = vmatprep.subr.mxu0 0.0
    %2752 = vmatpush2.msra.mxu0 0.0
    %2753 = vmatprep.subr.mxu0 0.0
    %2754 = vmatpush2.msra.mxu0 0.0
    %2755 = vmatprep.subr.mxu0 0.0
    %2756 = vmatpush2.msra.mxu0 0.0
    %2757 = vmatprep.subr.mxu0 0.0
    %2758 = vmatpush2.msra.mxu0 0.0
    %2759 = vmatprep.subr.mxu0 0.0
    %2760 = vmatpush2.msra.mxu0 0.0
    %2761 = vmatprep.subr.mxu0 0.0
    %2762 = vmatpush2.msra.mxu0 0.0
    %2763 = vmatprep.subr.mxu0 0.0
    %2764 = vmatpush2.msra.mxu0 0.0
    %2765 = vmatprep.subr.mxu0 0.0
    %2766 = vmatpush2.msra.mxu0 0.0
    %2767 = vmatprep.mubr.f32.mxu0 0.0
    %2768 = vmatmul.mubr.f32.gmra.mxu0 %v2701
    %v2769 = vpop.f32.mrf.mxu0
    %v2770 = vadd.f32 0.0, %v2769
    %v2771 = vpop.f32.mrf.mxu0
    %2772 = vdwg.mxu0
    %v2774 = vrot.slane %v2770, 6
    %v2775 = vrot.slane %v2770, 7
    %v2778 = vadd.f32 %v2519, %v2774
    %v2779 = vadd.f32 %v2524, %v2775
    %v2780 = vtanh.pop %v2778
    %v2781 = vtanh.pop %v2779
    %v2784 = vrot.slane %v2780, 2
    %v2785 = vrot.slane %v2781, 1
    %v2786 = vsel %vm2426, %v2785, %v2784
    %v2787 = vsel %vm2531, %v2786, 0
    %2789 = vmatprep.subr.mxu0 0.0
    %2790 = vmatpush1.msra.mxu0 0.0
    %2791 = vmatprep.subr.mxu0 0.0
    %2792 = vmatpush1.msra.mxu0 0.0
    %2793 = vmatprep.subr.mxu0 0.0
    %2794 = vmatpush1.msra.mxu0 0.0
    %2795 = vmatprep.subr.mxu0 0.0
    %2796 = vmatpush1.msra.mxu0 0.0
    %2797 = vmatprep.subr.mxu0 0.0
    %2798 = vmatpush1.msra.mxu0 0.0
    %2799 = vmatprep.subr.mxu0 0.0
    %2800 = vmatpush1.msra.mxu0 0.0
    %2801 = vmatprep.subr.mxu0 0.0
    %2802 = vmatpush1.msra.mxu0 0.0
    %2803 = vmatprep.subr.mxu0 0.0
    %2804 = vmatpush1.msra.mxu0 0.0
    %2805 = vmatprep.subr.mxu0 0.0
    %2806 = vmatpush1.msra.mxu0 0.0
    %2807 = vmatprep.subr.mxu0 0.0
    %2808 = vmatpush1.msra.mxu0 0.0
    %2809 = vmatprep.subr.mxu0 0.0
    %2810 = vmatpush1.msra.mxu0 0.0
    %2811 = vmatprep.subr.mxu0 0.0
    %2812 = vmatpush1.msra.mxu0 0.0
    %2813 = vmatprep.subr.mxu0 0.0
    %2814 = vmatpush1.msra.mxu0 %v2530
    %2815 = vmatprep.subr.mxu0 0.0
    %2816 = vmatpush1.msra.mxu0 %v2529
    %2817 = vmatprep.subr.mxu0 0.0
    %2818 = vmatpush1.msra.mxu0 %v2528
    %2819 = vmatprep.subr.mxu0 0.0
    %2820 = vmatpush1.msra.mxu0 %v2527
    %2821 = vmatprep.subr.mxu0 0.0
    %2822 = vmatpush2.msra.mxu0 0.0
    %2823 = vmatprep.subr.mxu0 0.0
    %2824 = vmatpush2.msra.mxu0 0.0
    %2825 = vmatprep.subr.mxu0 0.0
    %2826 = vmatpush2.msra.mxu0 0.0
    %2827 = vmatprep.subr.mxu0 0.0
    %2828 = vmatpush2.msra.mxu0 0.0
    %2829 = vmatprep.subr.mxu0 0.0
    %2830 = vmatpush2.msra.mxu0 0.0
    %2831 = vmatprep.subr.mxu0 0.0
    %2832 = vmatpush2.msra.mxu0 0.0
    %2833 = vmatprep.subr.mxu0 0.0
    %2834 = vmatpush2.msra.mxu0 0.0
    %2835 = vmatprep.subr.mxu0 0.0
    %2836 = vmatpush2.msra.mxu0 0.0
    %2837 = vmatprep.subr.mxu0 0.0
    %2838 = vmatpush2.msra.mxu0 0.0
    %2839 = vmatprep.subr.mxu0 0.0
    %2840 = vmatpush2.msra.mxu0 0.0
    %2841 = vmatprep.subr.mxu0 0.0
    %2842 = vmatpush2.msra.mxu0 0.0
    %2843 = vmatprep.subr.mxu0 0.0
    %2844 = vmatpush2.msra.mxu0 0.0
    %2845 = vmatprep.subr.mxu0 0.0
    %2846 = vmatpush2.msra.mxu0 0.0
    %2847 = vmatprep.subr.mxu0 0.0
    %2848 = vmatpush2.msra.mxu0 0.0
    %2849 = vmatprep.subr.mxu0 0.0
    %2850 = vmatpush2.msra.mxu0 0.0
    %2851 = vmatprep.subr.mxu0 0.0
    %2852 = vmatpush2.msra.mxu0 0.0
    %2853 = vmatprep.mubr.f32.mxu0 0.0
    %2854 = vmatmul.mubr.f32.gmra.mxu0 %v2787
    %v2855 = vpop.f32.mrf.mxu0
    %v2856 = vadd.f32 0.0, %v2855
    %v2857 = vpop.f32.mrf.mxu0
    %2858 = vdwg.mxu0
    %v2860 = vrot.slane %v2856, 5
    %v2861 = vrot.slane %v2856, 6
    %v2864 = vadd.f32 %v2519, %v2860
    %v2865 = vadd.f32 %v2524, %v2861
    %v2866 = vtanh.pop %v2864
    %v2867 = vtanh.pop %v2865
    %v2870 = vrot.slane %v2866, 3
    %v2871 = vrot.slane %v2867, 2
    %v2872 = vsel %vm2426, %v2871, %v2870
    %v2873 = vsel %vm2531, %v2872, 0
    %2875 = vmatprep.subr.mxu0 0.0
    %2876 = vmatpush1.msra.mxu0 0.0
    %2877 = vmatprep.subr.mxu0 0.0
    %2878 = vmatpush1.msra.mxu0 0.0
    %2879 = vmatprep.subr.mxu0 0.0
    %2880 = vmatpush1.msra.mxu0 0.0
    %2881 = vmatprep.subr.mxu0 0.0
    %2882 = vmatpush1.msra.mxu0 0.0
    %2883 = vmatprep.subr.mxu0 0.0
    %2884 = vmatpush1.msra.mxu0 0.0
    %2885 = vmatprep.subr.mxu0 0.0
    %2886 = vmatpush1.msra.mxu0 0.0
    %2887 = vmatprep.subr.mxu0 0.0
    %2888 = vmatpush1.msra.mxu0 0.0
    %2889 = vmatprep.subr.mxu0 0.0
    %2890 = vmatpush1.msra.mxu0 0.0
    %2891 = vmatprep.subr.mxu0 0.0
    %2892 = vmatpush1.msra.mxu0 0.0
    %2893 = vmatprep.subr.mxu0 0.0
    %2894 = vmatpush1.msra.mxu0 0.0
    %2895 = vmatprep.subr.mxu0 0.0
    %2896 = vmatpush1.msra.mxu0 0.0
    %2897 = vmatprep.subr.mxu0 0.0
    %2898 = vmatpush1.msra.mxu0 0.0
    %2899 = vmatprep.subr.mxu0 0.0
    %2900 = vmatpush1.msra.mxu0 %v2530
    %2901 = vmatprep.subr.mxu0 0.0
    %2902 = vmatpush1.msra.mxu0 %v2529
    %2903 = vmatprep.subr.mxu0 0.0
    %2904 = vmatpush1.msra.mxu0 %v2528
    %2905 = vmatprep.subr.mxu0 0.0
    %2906 = vmatpush1.msra.mxu0 %v2527
    %2907 = vmatprep.subr.mxu0 0.0
    %2908 = vmatpush2.msra.mxu0 0.0
    %2909 = vmatprep.subr.mxu0 0.0
    %2910 = vmatpush2.msra.mxu0 0.0
    %2911 = vmatprep.subr.mxu0 0.0
    %2912 = vmatpush2.msra.mxu0 0.0
    %2913 = vmatprep.subr.mxu0 0.0
    %2914 = vmatpush2.msra.mxu0 0.0
    %2915 = vmatprep.subr.mxu0 0.0
    %2916 = vmatpush2.msra.mxu0 0.0
    %2917 = vmatprep.subr.mxu0 0.0
    %2918 = vmatpush2.msra.mxu0 0.0
    %2919 = vmatprep.subr.mxu0 0.0
    %2920 = vmatpush2.msra.mxu0 0.0
    %2921 = vmatprep.subr.mxu0 0.0
    %2922 = vmatpush2.msra.mxu0 0.0
    %2923 = vmatprep.subr.mxu0 0.0
    %2924 = vmatpush2.msra.mxu0 0.0
    %2925 = vmatprep.subr.mxu0 0.0
    %2926 = vmatpush2.msra.mxu0 0.0
    %2927 = vmatprep.subr.mxu0 0.0
    %2928 = vmatpush2.msra.mxu0 0.0
    %2929 = vmatprep.subr.mxu0 0.0
    %2930 = vmatpush2.msra.mxu0 0.0
    %2931 = vmatprep.subr.mxu0 0.0
    %2932 = vmatpush2.msra.mxu0 0.0
    %2933 = vmatprep.subr.mxu0 0.0
    %2934 = vmatpush2.msra.mxu0 0.0
    %2935 = vmatprep.subr.mxu0 0.0
    %2936 = vmatpush2.msra.mxu0 0.0
    %2937 = vmatprep.subr.mxu0 0.0
    %2938 = vmatpush2.msra.mxu0 0.0
    %2939 = vmatprep.mubr.f32.mxu0 0.0
    %2940 = vmatmul.mubr.f32.gmra.mxu0 %v2873
    %v2941 = vpop.f32.mrf.mxu0
    %v2942 = vadd.f32 0.0, %v2941
    %v2943 = vpop.f32.mrf.mxu0
    %2944 = vdwg.mxu0
    %v2946 = vrot.slane %v2942, 4
    %v2947 = vrot.slane %v2942, 5
    %v2950 = vadd.f32 %v2519, %v2946
    %v2951 = vadd.f32 %v2524, %v2947
    %v2952 = vtanh.pop %v2950
    %v2953 = vtanh.pop %v2951
    %v2956 = vrot.slane %v2952, 4
    %v2957 = vrot.slane %v2953, 3
    %v2958 = vsel %vm2426, %v2957, %v2956
    %v2959 = vsel %vm2531, %v2958, 0
    %2961 = vmatprep.subr.mxu0 0.0
    %2962 = vmatpush1.msra.mxu0 0.0
    %2963 = vmatprep.subr.mxu0 0.0
    %2964 = vmatpush1.msra.mxu0 0.0
    %2965 = vmatprep.subr.mxu0 0.0
    %2966 = vmatpush1.msra.mxu0 0.0
    %2967 = vmatprep.subr.mxu0 0.0
    %2968 = vmatpush1.msra.mxu0 0.0
    %2969 = vmatprep.subr.mxu0 0.0
    %2970 = vmatpush1.msra.mxu0 0.0
    %2971 = vmatprep.subr.mxu0 0.0
    %2972 = vmatpush1.msra.mxu0 0.0
    %2973 = vmatprep.subr.mxu0 0.0
    %2974 = vmatpush1.msra.mxu0 0.0
    %2975 = vmatprep.subr.mxu0 0.0
    %2976 = vmatpush1.msra.mxu0 0.0
    %2977 = vmatprep.subr.mxu0 0.0
    %2978 = vmatpush1.msra.mxu0 0.0
    %2979 = vmatprep.subr.mxu0 0.0
    %2980 = vmatpush1.msra.mxu0 0.0
    %2981 = vmatprep.subr.mxu0 0.0
    %2982 = vmatpush1.msra.mxu0 0.0
    %2983 = vmatprep.subr.mxu0 0.0
    %2984 = vmatpush1.msra.mxu0 0.0
    %2985 = vmatprep.subr.mxu0 0.0
    %2986 = vmatpush1.msra.mxu0 %v2530
    %2987 = vmatprep.subr.mxu0 0.0
    %2988 = vmatpush1.msra.mxu0 %v2529
    %2989 = vmatprep.subr.mxu0 0.0
    %2990 = vmatpush1.msra.mxu0 %v2528
    %2991 = vmatprep.subr.mxu0 0.0
    %2992 = vmatpush1.msra.mxu0 %v2527
    %2993 = vmatprep.subr.mxu0 0.0
    %2994 = vmatpush2.msra.mxu0 0.0
    %2995 = vmatprep.subr.mxu0 0.0
    %2996 = vmatpush2.msra.mxu0 0.0
    %2997 = vmatprep.subr.mxu0 0.0
    %2998 = vmatpush2.msra.mxu0 0.0
    %2999 = vmatprep.subr.mxu0 0.0
    %3000 = vmatpush2.msra.mxu0 0.0
    %3001 = vmatprep.subr.mxu0 0.0
    %3002 = vmatpush2.msra.mxu0 0.0
    %3003 = vmatprep.subr.mxu0 0.0
    %3004 = vmatpush2.msra.mxu0 0.0
    %3005 = vmatprep.subr.mxu0 0.0
    %3006 = vmatpush2.msra.mxu0 0.0
    %3007 = vmatprep.subr.mxu0 0.0
    %3008 = vmatpush2.msra.mxu0 0.0
    %3009 = vmatprep.subr.mxu0 0.0
    %3010 = vmatpush2.msra.mxu0 0.0
    %3011 = vmatprep.subr.mxu0 0.0
    %3012 = vmatpush2.msra.mxu0 0.0
    %3013 = vmatprep.subr.mxu0 0.0
    %3014 = vmatpush2.msra.mxu0 0.0
    %3015 = vmatprep.subr.mxu0 0.0
    %3016 = vmatpush2.msra.mxu0 0.0
    %3017 = vmatprep.subr.mxu0 0.0
    %3018 = vmatpush2.msra.mxu0 0.0
    %3019 = vmatprep.subr.mxu0 0.0
    %3020 = vmatpush2.msra.mxu0 0.0
    %3021 = vmatprep.subr.mxu0 0.0
    %3022 = vmatpush2.msra.mxu0 0.0
    %3023 = vmatprep.subr.mxu0 0.0
    %3024 = vmatpush2.msra.mxu0 0.0
    %3025 = vmatprep.mubr.f32.mxu0 0.0
    %3026 = vmatmul.mubr.f32.gmra.mxu0 %v2959
    %v3027 = vpop.f32.mrf.mxu0
    %v3028 = vadd.f32 0.0, %v3027
    %v3029 = vpop.f32.mrf.mxu0
    %3030 = vdwg.mxu0
    %v3032 = vrot.slane %v3028, 3
    %v3033 = vrot.slane %v3028, 4
    %v3036 = vadd.f32 %v2519, %v3032
    %v3037 = vadd.f32 %v2524, %v3033
    %v3038 = vtanh.pop %v3036
    %v3039 = vtanh.pop %v3037
    %v3042 = vrot.slane %v3038, 5
    %v3043 = vrot.slane %v3039, 4
    %v3044 = vsel %vm2426, %v3043, %v3042
    %v3045 = vsel %vm2531, %v3044, 0
    %3047 = vmatprep.subr.mxu0 0.0
    %3048 = vmatpush1.msra.mxu0 0.0
    %3049 = vmatprep.subr.mxu0 0.0
    %3050 = vmatpush1.msra.mxu0 0.0
    %3051 = vmatprep.subr.mxu0 0.0
    %3052 = vmatpush1.msra.mxu0 0.0
    %3053 = vmatprep.subr.mxu0 0.0
    %3054 = vmatpush1.msra.mxu0 0.0
    %3055 = vmatprep.subr.mxu0 0.0
    %3056 = vmatpush1.msra.mxu0 0.0
    %3057 = vmatprep.subr.mxu0 0.0
    %3058 = vmatpush1.msra.mxu0 0.0
    %3059 = vmatprep.subr.mxu0 0.0
    %3060 = vmatpush1.msra.mxu0 0.0
    %3061 = vmatprep.subr.mxu0 0.0
    %3062 = vmatpush1.msra.mxu0 0.0
    %3063 = vmatprep.subr.mxu0 0.0
    %3064 = vmatpush1.msra.mxu0 0.0
    %3065 = vmatprep.subr.mxu0 0.0
    %3066 = vmatpush1.msra.mxu0 0.0
    %3067 = vmatprep.subr.mxu0 0.0
    %3068 = vmatpush1.msra.mxu0 0.0
    %3069 = vmatprep.subr.mxu0 0.0
    %3070 = vmatpush1.msra.mxu0 0.0
    %3071 = vmatprep.subr.mxu0 0.0
    %3072 = vmatpush1.msra.mxu0 %v2530
    %3073 = vmatprep.subr.mxu0 0.0
    %3074 = vmatpush1.msra.mxu0 %v2529
    %3075 = vmatprep.subr.mxu0 0.0
    %3076 = vmatpush1.msra.mxu0 %v2528
    %3077 = vmatprep.subr.mxu0 0.0
    %3078 = vmatpush1.msra.mxu0 %v2527
    %3079 = vmatprep.subr.mxu0 0.0
    %3080 = vmatpush2.msra.mxu0 0.0
    %3081 = vmatprep.subr.mxu0 0.0
    %3082 = vmatpush2.msra.mxu0 0.0
    %3083 = vmatprep.subr.mxu0 0.0
    %3084 = vmatpush2.msra.mxu0 0.0
    %3085 = vmatprep.subr.mxu0 0.0
    %3086 = vmatpush2.msra.mxu0 0.0
    %3087 = vmatprep.subr.mxu0 0.0
    %3088 = vmatpush2.msra.mxu0 0.0
    %3089 = vmatprep.subr.mxu0 0.0
    %3090 = vmatpush2.msra.mxu0 0.0
    %3091 = vmatprep.subr.mxu0 0.0
    %3092 = vmatpush2.msra.mxu0 0.0
    %3093 = vmatprep.subr.mxu0 0.0
    %3094 = vmatpush2.msra.mxu0 0.0
    %3095 = vmatprep.subr.mxu0 0.0
    %3096 = vmatpush2.msra.mxu0 0.0
    %3097 = vmatprep.subr.mxu0 0.0
    %3098 = vmatpush2.msra.mxu0 0.0
    %3099 = vmatprep.subr.mxu0 0.0
    %3100 = vmatpush2.msra.mxu0 0.0
    %3101 = vmatprep.subr.mxu0 0.0
    %3102 = vmatpush2.msra.mxu0 0.0
    %3103 = vmatprep.subr.mxu0 0.0
    %3104 = vmatpush2.msra.mxu0 0.0
    %3105 = vmatprep.subr.mxu0 0.0
    %3106 = vmatpush2.msra.mxu0 0.0
    %3107 = vmatprep.subr.mxu0 0.0
    %3108 = vmatpush2.msra.mxu0 0.0
    %3109 = vmatprep.subr.mxu0 0.0
    %3110 = vmatpush2.msra.mxu0 0.0
    %3111 = vmatprep.mubr.f32.mxu0 0.0
    %3112 = vmatmul.mubr.f32.gmra.mxu0 %v3045
    %v3113 = vpop.f32.mrf.mxu0
    %v3114 = vadd.f32 0.0, %v3113
    %v3115 = vpop.f32.mrf.mxu0
    %3116 = vdwg.mxu0
    %v3118 = vrot.slane %v3114, 2
    %v3119 = vrot.slane %v3114, 3
    %v3122 = vadd.f32 %v2519, %v3118
    %v3123 = vadd.f32 %v2524, %v3119
    %v3124 = vtanh.pop %v3122
    %v3125 = vtanh.pop %v3123
    %v3128 = vrot.slane %v3124, 6
    %v3129 = vrot.slane %v3125, 5
    %v3130 = vsel %vm2426, %v3129, %v3128
    %v3131 = vsel %vm2531, %v3130, 0
    %3133 = vmatprep.subr.mxu0 0.0
    %3134 = vmatpush1.msra.mxu0 0.0
    %3135 = vmatprep.subr.mxu0 0.0
    %3136 = vmatpush1.msra.mxu0 0.0
    %3137 = vmatprep.subr.mxu0 0.0
    %3138 = vmatpush1.msra.mxu0 0.0
    %3139 = vmatprep.subr.mxu0 0.0
    %3140 = vmatpush1.msra.mxu0 0.0
    %3141 = vmatprep.subr.mxu0 0.0
    %3142 = vmatpush1.msra.mxu0 0.0
    %3143 = vmatprep.subr.mxu0 0.0
    %3144 = vmatpush1.msra.mxu0 0.0
    %3145 = vmatprep.subr.mxu0 0.0
    %3146 = vmatpush1.msra.mxu0 0.0
    %3147 = vmatprep.subr.mxu0 0.0
    %3148 = vmatpush1.msra.mxu0 0.0
    %3149 = vmatprep.subr.mxu0 0.0
    %3150 = vmatpush1.msra.mxu0 0.0
    %3151 = vmatprep.subr.mxu0 0.0
    %3152 = vmatpush1.msra.mxu0 0.0
    %3153 = vmatprep.subr.mxu0 0.0
    %3154 = vmatpush1.msra.mxu0 0.0
    %3155 = vmatprep.subr.mxu0 0.0
    %3156 = vmatpush1.msra.mxu0 0.0
    %3157 = vmatprep.subr.mxu0 0.0
    %3158 = vmatpush1.msra.mxu0 %v2530
    %3159 = vmatprep.subr.mxu0 0.0
    %3160 = vmatpush1.msra.mxu0 %v2529
    %3161 = vmatprep.subr.mxu0 0.0
    %3162 = vmatpush1.msra.mxu0 %v2528
    %3163 = vmatprep.subr.mxu0 0.0
    %3164 = vmatpush1.msra.mxu0 %v2527
    %3165 = vmatprep.subr.mxu0 0.0
    %3166 = vmatpush2.msra.mxu0 0.0
    %3167 = vmatprep.subr.mxu0 0.0
    %3168 = vmatpush2.msra.mxu0 0.0
    %3169 = vmatprep.subr.mxu0 0.0
    %3170 = vmatpush2.msra.mxu0 0.0
    %3171 = vmatprep.subr.mxu0 0.0
    %3172 = vmatpush2.msra.mxu0 0.0
    %3173 = vmatprep.subr.mxu0 0.0
    %3174 = vmatpush2.msra.mxu0 0.0
    %3175 = vmatprep.subr.mxu0 0.0
    %3176 = vmatpush2.msra.mxu0 0.0
    %3177 = vmatprep.subr.mxu0 0.0
    %3178 = vmatpush2.msra.mxu0 0.0
    %3179 = vmatprep.subr.mxu0 0.0
    %3180 = vmatpush2.msra.mxu0 0.0
    %3181 = vmatprep.subr.mxu0 0.0
    %3182 = vmatpush2.msra.mxu0 0.0
    %3183 = vmatprep.subr.mxu0 0.0
    %3184 = vmatpush2.msra.mxu0 0.0
    %3185 = vmatprep.subr.mxu0 0.0
    %3186 = vmatpush2.msra.mxu0 0.0
    %3187 = vmatprep.subr.mxu0 0.0
    %3188 = vmatpush2.msra.mxu0 0.0
    %3189 = vmatprep.subr.mxu0 0.0
    %3190 = vmatpush2.msra.mxu0 0.0
    %3191 = vmatprep.subr.mxu0 0.0
    %3192 = vmatpush2.msra.mxu0 0.0
    %3193 = vmatprep.subr.mxu0 0.0
    %3194 = vmatpush2.msra.mxu0 0.0
    %3195 = vmatprep.subr.mxu0 0.0
    %3196 = vmatpush2.msra.mxu0 0.0
    %3197 = vmatprep.mubr.f32.mxu0 0.0
    %3198 = vmatmul.mubr.f32.gmra.mxu0 %v3131
    %v3199 = vpop.f32.mrf.mxu0
    %v3200 = vadd.f32 0.0, %v3199
    %v3201 = vpop.f32.mrf.mxu0
    %3202 = vdwg.mxu0
    %v3204 = vrot.slane %v3200, 1
    %v3205 = vrot.slane %v3200, 2
    %v3208 = vadd.f32 %v2519, %v3204
    %v3209 = vadd.f32 %v2524, %v3205
    %v3210 = vtanh.pop %v3208
    %v3211 = vtanh.pop %v3209
    %v3212 = vld [vmem:[%s11] sm:$0xff]
    %v3213 = vld [vmem:[%s11 + $0x8] sm:$0xff]
    %v3214 = vld [vmem:[%s11 + $0x10] sm:$0xff]
    %v3215 = vld [vmem:[%s11 + $0x18] sm:$0xff]
    %v3216 = vld [vmem:[%s12] sm:$0x1]
    %v3218 = vlaneseq
    %v3219 = vshrl.u32 %v3218, 7
    %v3220 = vsub.s32 0, %v3219
    %v3221 = vrot.slane %v3216, %v3220
    %v3225 = vrot.slane %v3210, 7
    %v3226 = vrot.slane %v3211, 6
    %v3227 = vsel %vm2426, %v3226, %v3225
    %v3228 = vsel %vm2531, %v3227, 0
    %3230 = vmatprep.subr.mxu0 0.0
    %3231 = vmatpush1.msra.mxu0 0.0
    %3232 = vmatprep.subr.mxu0 0.0
    %3233 = vmatpush1.msra.mxu0 0.0
    %3234 = vmatprep.subr.mxu0 0.0
    %3235 = vmatpush1.msra.mxu0 0.0
    %3236 = vmatprep.subr.mxu0 0.0
    %3237 = vmatpush1.msra.mxu0 0.0
    %3238 = vmatprep.subr.mxu0 0.0
    %3239 = vmatpush1.msra.mxu0 0.0
    %3240 = vmatprep.subr.mxu0 0.0
    %3241 = vmatpush1.msra.mxu0 0.0
    %3242 = vmatprep.subr.mxu0 0.0
    %3243 = vmatpush1.msra.mxu0 0.0
    %3244 = vmatprep.subr.mxu0 0.0
    %3245 = vmatpush1.msra.mxu0 0.0
    %3246 = vmatprep.subr.mxu0 0.0
    %3247 = vmatpush1.msra.mxu0 0.0
    %3248 = vmatprep.subr.mxu0 0.0
    %3249 = vmatpush1.msra.mxu0 0.0
    %3250 = vmatprep.subr.mxu0 0.0
    %3251 = vmatpush1.msra.mxu0 0.0
    %3252 = vmatprep.subr.mxu0 0.0
    %3253 = vmatpush1.msra.mxu0 0.0
    %3254 = vmatprep.subr.mxu0 0.0
    %3255 = vmatpush1.msra.mxu0 %v3215
    %3256 = vmatprep.subr.mxu0 0.0
    %3257 = vmatpush1.msra.mxu0 %v3214
    %3258 = vmatprep.subr.mxu0 0.0
    %3259 = vmatpush1.msra.mxu0 %v3213
    %3260 = vmatprep.subr.mxu0 0.0
    %3261 = vmatpush1.msra.mxu0 %v3212
    %3262 = vmatprep.subr.mxu0 0.0
    %3263 = vmatpush2.msra.mxu0 0.0
    %3264 = vmatprep.subr.mxu0 0.0
    %3265 = vmatpush2.msra.mxu0 0.0
    %3266 = vmatprep.subr.mxu0 0.0
    %3267 = vmatpush2.msra.mxu0 0.0
    %3268 = vmatprep.subr.mxu0 0.0
    %3269 = vmatpush2.msra.mxu0 0.0
    %3270 = vmatprep.subr.mxu0 0.0
    %3271 = vmatpush2.msra.mxu0 0.0
    %3272 = vmatprep.subr.mxu0 0.0
    %3273 = vmatpush2.msra.mxu0 0.0
    %3274 = vmatprep.subr.mxu0 0.0
    %3275 = vmatpush2.msra.mxu0 0.0
    %3276 = vmatprep.subr.mxu0 0.0
    %3277 = vmatpush2.msra.mxu0 0.0
    %3278 = vmatprep.subr.mxu0 0.0
    %3279 = vmatpush2.msra.mxu0 0.0
    %3280 = vmatprep.subr.mxu0 0.0
    %3281 = vmatpush2.msra.mxu0 0.0
    %3282 = vmatprep.subr.mxu0 0.0
    %3283 = vmatpush2.msra.mxu0 0.0
    %3284 = vmatprep.subr.mxu0 0.0
    %3285 = vmatpush2.msra.mxu0 0.0
    %3286 = vmatprep.subr.mxu0 0.0
    %3287 = vmatpush2.msra.mxu0 0.0
    %3288 = vmatprep.subr.mxu0 0.0
    %3289 = vmatpush2.msra.mxu0 0.0
    %3290 = vmatprep.subr.mxu0 0.0
    %3291 = vmatpush2.msra.mxu0 0.0
    %3292 = vmatprep.subr.mxu0 0.0
    %3293 = vmatpush2.msra.mxu0 0.0
    %3294 = vmatprep.mubr.f32.mxu0 0.0
    %3295 = vmatmul.mubr.f32.gmra.mxu0 %v3228
    %v3296 = vpop.f32.mrf.mxu0
    %v3297 = vadd.f32 %v3221, %v3296
    %v3298 = vpop.f32.mrf.mxu0
    %3299 = vdwg.mxu0
    %3301 = vrot.lane.b32.xlu0 %v3297, 4
    %v3302 = vpop.permute.xlu0 %3301
    %vm3304 = vcmask 31744
    %v3305 = vsel %vm3304, %v715, %v3302
    %vm3306 = vcmask 58368
    %3307 = vst.msk [vmem:[#allocation2] sm:$0x3] %vm3306, %v3305
    // Predicated region
    $region54: #{_lambda_.1} parent=1 // pred_check
      _
    $region55: #{_lambda_.1} parent=1 // pred_check_branch
      %3309 = sbr.rel (0) target = $region57
    $region56: #{_lambda_.1} parent=1 // pred_region
      %s3311 = ssub.s32 32, 32
      %3312 = vsyncadd [#allocation3], %s3311
      %s3314 = sshll.u32 [#allocation2], 4
      %s3315 = int_to_ptr.vmem [resolvable:$true] %s3314
      %3317 = dma.vmem_to_hbm [thread:$0]  %s3315, 32, %s13, [#allocation3]
    $region57: #{_lambda_.1} parent=1 // pred_fallthru
      _
    // Predicated region
    $region58: #{_lambda_.1} parent=1 // pred_check
      _
    $region59: #{_lambda_.1} parent=1 // pred_check_branch
      %3319 = sbr.rel (0) target = $region61
    $region60: #{_lambda_.1} parent=1 // pred_region
      %3320 = dma.done [#allocation3], 32
    $region61: #{_lambda_.1} parent=1 // pred_fallthru
      _
    %3321 = vsyncpa [#allocation3], 1

</llo_original>
